<compile_context>
chip_gen: v5e
topology: v5e:2x2
jax: 0.10.0
libtpu: 0.0.40
codegen_flags: <defaults>
</compile_context>

<pallas_src>
import jax
import jax.numpy as jnp
from jax.experimental import pallas as pl
from jax.experimental.pallas import tpu as pltpu

HIDDEN = 128      # lane-aligned hidden size (module default was 320 -> pad to 384)
VOCAB = 16        # small synthetic vocabulary
SEQ = 8           # demo sequence length


def _encoder_gru_kernel(tok_ref,      # SMEM int32[T] token ids (scalar prefetch)
                        emb_ref,      # (V, 1, H) f32 embedding table (VMEM-resident)
                        h0_ref,       # (1, H)    f32 initial hidden
                        wih_ref,      # (H, 3H)   f32 W_ih^T (VMEM-resident)
                        whh_ref,      # (H, 3H)   f32 W_hh^T (VMEM-resident)
                        bih_ref,      # (1, 3H)   f32 b_ih
                        bhh_ref,      # (1, 3H)   f32 b_hh
                        out_ref):     # (T, H)    f32 all GRU outputs
    T, H = out_ref.shape
    hp = jax.lax.Precision.HIGHEST

    # 1) Gather all T embedding rows from the VMEM-resident table.
    #    Dynamic leading-axis indexing (the paged-attention buffer-select pattern).
    x = jnp.concatenate([emb_ref[tok_ref[t]] for t in range(T)], axis=0)   # (T, H)

    # 2) Input projection for ALL tokens at once: one M=T MXU matmul.
    gx = jnp.dot(x, wih_ref[...], precision=hp,
                 preferred_element_type=jnp.float32) + bih_ref[...]        # (T, 3H)

    # 3) Recurrence, statically unrolled (T is small & static at trace time).
    #    TODO(synk): for long sequences switch to lax.fori_loop with pl.ds
    #    row indexing instead of a full static unroll.
    w_hh = whh_ref[...]
    b_hh = bhh_ref[...]
    h = h0_ref[...]                                                        # (1, H) f32
    outs = []
    for t in range(T):
        gh = jnp.dot(h, w_hh, precision=hp,
                     preferred_element_type=jnp.float32) + b_hh            # (1, 3H)
        gx_t = gx[t:t + 1, :]                                              # (1, 3H)
        # PyTorch GRU gate order: r, z, n.
        r = jax.nn.sigmoid(gx_t[:, :H] + gh[:, :H])
        z = jax.nn.sigmoid(gx_t[:, H:2 * H] + gh[:, H:2 * H])
        n = jnp.tanh(gx_t[:, 2 * H:] + r * gh[:, 2 * H:])
        h = (1.0 - z) * n + z * h
        outs.append(h)

    # One dense, unmasked (T, H) store.
    out_ref[...] = jnp.concatenate(outs, axis=0)


def _encode(tokens, emb_table, h0, w_ih_t, w_hh_t, b_ih, b_hh):
    """tokens: int32[T]; emb_table: (V,H) f32; h0: (1,H) f32 -> (T,H) f32 outputs."""
    T = int(tokens.shape[0])
    V, H = emb_table.shape
    emb3 = emb_table.reshape(V, 1, H)   # leading axis = gather axis (non-tiled)

    def const(shape):
        return pl.BlockSpec(shape, lambda i, tok, _s=len(shape): (0,) * _s)

    grid_spec = pltpu.PrefetchScalarGridSpec(
        num_scalar_prefetch=1,          # token ids -> SMEM, available in-kernel
        grid=(1,),                      # single invocation; loop lives in-kernel
        in_specs=[
            const((V, 1, H)),           # embedding table (VMEM-resident)
            const((1, H)),              # h0
            const((H, 3 * H)),          # W_ih^T
            const((H, 3 * H)),          # W_hh^T
            const((1, 3 * H)),          # b_ih
            const((1, 3 * H)),          # b_hh
        ],
        out_specs=const((T, H)),
    )

    return pl.pallas_call(
        _encoder_gru_kernel,
        out_shape=jax.ShapeDtypeStruct((T, H), jnp.float32),
        grid_spec=grid_spec,
        compiler_params=pltpu.CompilerParams(
            dimension_semantics=("arbitrary",)),
    )(tokens, emb3, h0, w_ih_t, w_hh_t, b_ih, b_hh)


class EncoderRNN:
    """JAX/Pallas port of the PyTorch EncoderRNN forward pass."""

    def __init__(self, input_size, hidden_size, key):
        self.hidden_size = hidden_size
        k_emb, k_wih, k_whh, k_bih, k_bhh = jax.random.split(key, 5)

        # nn.Embedding default init: N(0, 1), float32 (matches PyTorch dtype).
        self.embedding = jax.random.normal(
            k_emb, (input_size, hidden_size), dtype=jnp.float32)

        # nn.GRU default init: U(-1/sqrt(H), 1/sqrt(H)) for all params.
        bound = 1.0 / (hidden_size ** 0.5)
        u = lambda k, shape: jax.random.uniform(
            k, shape, dtype=jnp.float32, minval=-bound, maxval=bound)

        # Stored transposed (H, 3H) so the kernel does x @ W^T directly.
        self.w_ih_t = u(k_wih, (hidden_size, 3 * hidden_size))
        self.w_hh_t = u(k_whh, (hidden_size, 3 * hidden_size))
        self.b_ih = u(k_bih, (1, 3 * hidden_size))
        self.b_hh = u(k_bhh, (1, 3 * hidden_size))

    def __call__(self, input_token, hidden):
        """Single-step forward, matching the PyTorch module semantics.
        input_token: int32[1]; hidden: (1, 1, H).
        NOTE: for autoregressive/sequence use, prefer encode_sequence (the
        token loop runs inside one kernel and weights stay VMEM-resident)."""
        H = self.hidden_size
        outs = _encode(input_token.reshape(1).astype(jnp.int32),
                       self.embedding,
                       hidden.reshape(1, H).astype(jnp.float32),
                       self.w_ih_t, self.w_hh_t, self.b_ih, self.b_hh)
        # For a 1-layer unidirectional GRU, output == new hidden.
        out = outs.reshape(1, 1, H)
        return out, out

    def encode_sequence(self, tokens, hidden):
        """Run the whole token sequence in ONE pallas_call.
        Returns ((T, H) outputs, (1, 1, H) final hidden)."""
        H = self.hidden_size
        outs = _encode(tokens.astype(jnp.int32),
                       self.embedding,
                       hidden.reshape(1, H).astype(jnp.float32),
                       self.w_ih_t, self.w_hh_t, self.b_ih, self.b_hh)
        return outs, outs[-1].reshape(1, 1, H)

    def init_hidden(self):
        return jnp.zeros((1, 1, self.hidden_size), dtype=jnp.float32)


def _reference_gru(tokens, enc, hidden):
    """Pure-JAX float32 reference (PyTorch nn.GRU semantics)."""
    H = enc.hidden_size
    hp = jax.lax.Precision.HIGHEST
    h = hidden.reshape(1, H).astype(jnp.float32)
    outs = []
    for t in range(tokens.shape[0]):
        x = enc.embedding[tokens[t]].reshape(1, H)
        gx = jnp.dot(x, enc.w_ih_t, precision=hp) + enc.b_ih
        gh = jnp.dot(h, enc.w_hh_t, precision=hp) + enc.b_hh
        r = jax.nn.sigmoid(gx[:, :H] + gh[:, :H])
        z = jax.nn.sigmoid(gx[:, H:2 * H] + gh[:, H:2 * H])
        n = jnp.tanh(gx[:, 2 * H:] + r * gh[:, 2 * H:])
        h = (1.0 - z) * n + z * h
        outs.append(h)
    return jnp.concatenate(outs, axis=0), h


if __name__ == "__main__":
    key = jax.random.PRNGKey(0)
    k_model, k_tok = jax.random.split(key)

    enc = EncoderRNN(VOCAB, HIDDEN, k_model)

    tokens = jax.random.randint(k_tok, (SEQ,), 0, VOCAB, dtype=jnp.int32)
    hidden = enc.init_hidden()

    # Single-step forward (original module's calling convention).
    out1, h1 = enc(tokens[:1], hidden)
    out1 = jax.block_until_ready(out1)
    h1 = jax.block_until_ready(h1)
    assert out1.shape == (1, 1, HIDDEN)
    assert h1.shape == (1, 1, HIDDEN)

    # Full sequence encoded in a single pallas_call (token loop inside kernel).
    outs, h_final = enc.encode_sequence(tokens, hidden)
    outs = jax.block_until_ready(outs)
    h_final = jax.block_until_ready(h_final)
    assert outs.shape == (SEQ, HIDDEN)
    assert h_final.shape == (1, 1, HIDDEN)

    ref_outs, ref_h = _reference_gru(tokens, enc, hidden)
    assert jnp.allclose(out1.reshape(1, HIDDEN), ref_outs[:1], atol=5e-3, rtol=5e-3)
    assert jnp.allclose(outs, ref_outs, atol=5e-3, rtol=5e-3)
    assert jnp.allclose(h_final.reshape(1, HIDDEN), ref_h, atol=5e-3, rtol=5e-3)

    print("KERNEL_OK")
</pallas_src>

<mosaic_0001>
module attributes {stable_mosaic.version = 11 : i64} {
  func.func @_encoder_gru_kernel(%arg0: i32, %arg1: memref<1xi32, #tpu.memory_space<smem>>, %arg2: memref<16x1x128xf32, #tpu.memory_space<vmem>>, %arg3: memref<1x128xf32, #tpu.memory_space<vmem>>, %arg4: memref<128x384xf32, #tpu.memory_space<vmem>>, %arg5: memref<128x384xf32, #tpu.memory_space<vmem>>, %arg6: memref<1x384xf32, #tpu.memory_space<vmem>>, %arg7: memref<1x384xf32, #tpu.memory_space<vmem>>, %arg8: memref<1x128xf32, #tpu.memory_space<vmem>>) attributes {dimension_semantics = [#tpu.dimension_semantics<arbitrary>], iteration_bounds = array<i64: 1>, scalar_prefetch = 1 : i64, scratch_operands = 0 : i64, tpu.core_type = #tpu.core_type<tc>, window_params = [{pipeline_mode = #tpu.pipeline_mode<synchronous>, transform_indices = @transform_0, window_bounds = array<i64: 16, 1, 128>}, {pipeline_mode = #tpu.pipeline_mode<synchronous>, transform_indices = @transform_1, window_bounds = array<i64: 1, 128>}, {pipeline_mode = #tpu.pipeline_mode<synchronous>, transform_indices = @transform_2, window_bounds = array<i64: 128, 384>}, {pipeline_mode = #tpu.pipeline_mode<synchronous>, transform_indices = @transform_3, window_bounds = array<i64: 128, 384>}, {pipeline_mode = #tpu.pipeline_mode<synchronous>, transform_indices = @transform_4, window_bounds = array<i64: 1, 384>}, {pipeline_mode = #tpu.pipeline_mode<synchronous>, transform_indices = @transform_5, window_bounds = array<i64: 1, 384>}, {pipeline_mode = #tpu.pipeline_mode<synchronous>, transform_indices = @transform_6, window_bounds = array<i64: 1, 128>}]} {
    %c0 = arith.constant 0 : index
    %0 = memref.load %arg1[%c0] : memref<1xi32, #tpu.memory_space<smem>>
    %1 = arith.index_cast %0 : i32 to index
    %c0_0 = arith.constant 0 : index
    %c0_1 = arith.constant 0 : index
    %2 = vector.load %arg2[%1, %c0_0, %c0_1] : memref<16x1x128xf32, #tpu.memory_space<vmem>>, vector<1x1x128xf32>
    %3 = vector.shape_cast %2 : vector<1x1x128xf32> to vector<1x128xf32>
    %c0_2 = arith.constant 0 : index
    %c0_3 = arith.constant 0 : index
    %4 = vector.load %arg4[%c0_2, %c0_3] : memref<128x384xf32, #tpu.memory_space<vmem>>, vector<128x384xf32>
    %cst = arith.constant dense<0.000000e+00> : vector<1x384xf32>
    %5 = tpu.matmul %3, %4, %cst {dimension_numbers = #tpu.dot_dimension_numbers<[1], [0], [0], [1], [0, 0, 1, 1], [], []>, precision = #tpu.contract_precision<fp32>} : vector<1x128xf32>, vector<128x384xf32>, vector<1x384xf32> -> vector<1x384xf32>
    %c0_4 = arith.constant 0 : index
    %c0_5 = arith.constant 0 : index
    %6 = vector.load %arg6[%c0_4, %c0_5] : memref<1x384xf32, #tpu.memory_space<vmem>>, vector<1x384xf32>
    %7 = arith.addf %5, %6 : vector<1x384xf32>
    %c0_6 = arith.constant 0 : index
    %c0_7 = arith.constant 0 : index
    %8 = vector.load %arg5[%c0_6, %c0_7] : memref<128x384xf32, #tpu.memory_space<vmem>>, vector<128x384xf32>
    %c0_8 = arith.constant 0 : index
    %c0_9 = arith.constant 0 : index
    %9 = vector.load %arg7[%c0_8, %c0_9] : memref<1x384xf32, #tpu.memory_space<vmem>>, vector<1x384xf32>
    %c0_10 = arith.constant 0 : index
    %c0_11 = arith.constant 0 : index
    %10 = vector.load %arg3[%c0_10, %c0_11] : memref<1x128xf32, #tpu.memory_space<vmem>>, vector<1x128xf32>
    %cst_12 = arith.constant dense<0.000000e+00> : vector<1x384xf32>
    %11 = tpu.matmul %10, %8, %cst_12 {dimension_numbers = #tpu.dot_dimension_numbers<[1], [0], [0], [1], [0, 0, 1, 1], [], []>, precision = #tpu.contract_precision<fp32>} : vector<1x128xf32>, vector<128x384xf32>, vector<1x384xf32> -> vector<1x384xf32>
    %12 = arith.addf %11, %9 : vector<1x384xf32>
    %13 = vector.extract_strided_slice %7 {offsets = [0, 0], sizes = [1, 128], strides = [1, 1]} : vector<1x384xf32> to vector<1x128xf32>
    %14 = vector.extract_strided_slice %12 {offsets = [0, 0], sizes = [1, 128], strides = [1, 1]} : vector<1x384xf32> to vector<1x128xf32>
    %15 = arith.addf %13, %14 : vector<1x128xf32>
    %16 = arith.negf %15 : vector<1x128xf32>
    %17 = math.exp %16 : vector<1x128xf32>
    %cst_13 = arith.constant 1.000000e+00 : f32
    %18 = vector.broadcast %cst_13 : f32 to vector<1x128xf32>
    %19 = arith.addf %18, %17 : vector<1x128xf32>
    %20 = arith.divf %18, %19 : vector<1x128xf32>
    %21 = vector.extract_strided_slice %7 {offsets = [0, 128], sizes = [1, 128], strides = [1, 1]} : vector<1x384xf32> to vector<1x128xf32>
    %22 = vector.extract_strided_slice %12 {offsets = [0, 128], sizes = [1, 128], strides = [1, 1]} : vector<1x384xf32> to vector<1x128xf32>
    %23 = arith.addf %21, %22 : vector<1x128xf32>
    %24 = arith.negf %23 : vector<1x128xf32>
    %25 = math.exp %24 : vector<1x128xf32>
    %cst_14 = arith.constant 1.000000e+00 : f32
    %26 = vector.broadcast %cst_14 : f32 to vector<1x128xf32>
    %27 = arith.addf %26, %25 : vector<1x128xf32>
    %28 = arith.divf %26, %27 : vector<1x128xf32>
    %29 = vector.extract_strided_slice %7 {offsets = [0, 256], sizes = [1, 128], strides = [1, 1]} : vector<1x384xf32> to vector<1x128xf32>
    %30 = vector.extract_strided_slice %12 {offsets = [0, 256], sizes = [1, 128], strides = [1, 1]} : vector<1x384xf32> to vector<1x128xf32>
    %31 = arith.mulf %20, %30 : vector<1x128xf32>
    %32 = arith.addf %29, %31 : vector<1x128xf32>
    %33 = math.tanh %32 : vector<1x128xf32>
    %cst_15 = arith.constant 1.000000e+00 : f32
    %34 = vector.broadcast %cst_15 : f32 to vector<1x128xf32>
    %35 = arith.subf %34, %28 : vector<1x128xf32>
    %36 = arith.mulf %35, %33 : vector<1x128xf32>
    %37 = arith.mulf %28, %10 : vector<1x128xf32>
    %38 = arith.addf %36, %37 : vector<1x128xf32>
    %c0_16 = arith.constant 0 : index
    %c0_17 = arith.constant 0 : index
    %39 = vector.load %arg8[%c0_16, %c0_17] : memref<1x128xf32, #tpu.memory_space<vmem>>, vector<1x128xf32>
    tpu.vector_store %arg8[%c0_16, %c0_17], %38 {strides = array<i32>} : memref<1x128xf32, #tpu.memory_space<vmem>>, vector<1x128xf32>,
    return
  }
  func.func @transform_0(%arg0: i32, %arg1: memref<1xi32, #tpu.memory_space<smem>>) -> (i32, i32, i32) {
    %c0_i32 = arith.constant 0 : i32
    %c0_i32_0 = arith.constant 0 : i32
    %c0_i32_1 = arith.constant 0 : i32
    %c0_i32_2 = arith.constant 0 : i32
    return %c0_i32, %c0_i32_0, %c0_i32_1 : i32, i32, i32
  }
  func.func @transform_1(%arg0: i32, %arg1: memref<1xi32, #tpu.memory_space<smem>>) -> (i32, i32) {
    %c0_i32 = arith.constant 0 : i32
    %c0_i32_0 = arith.constant 0 : i32
    %c0_i32_1 = arith.constant 0 : i32
    return %c0_i32, %c0_i32_0 : i32, i32
  }
  func.func @transform_2(%arg0: i32, %arg1: memref<1xi32, #tpu.memory_space<smem>>) -> (i32, i32) {
    %c0_i32 = arith.constant 0 : i32
    %c0_i32_0 = arith.constant 0 : i32
    %c0_i32_1 = arith.constant 0 : i32
    return %c0_i32, %c0_i32_0 : i32, i32
  }
  func.func @transform_3(%arg0: i32, %arg1: memref<1xi32, #tpu.memory_space<smem>>) -> (i32, i32) {
    %c0_i32 = arith.constant 0 : i32
    %c0_i32_0 = arith.constant 0 : i32
    %c0_i32_1 = arith.constant 0 : i32
    return %c0_i32, %c0_i32_0 : i32, i32
  }
  func.func @transform_4(%arg0: i32, %arg1: memref<1xi32, #tpu.memory_space<smem>>) -> (i32, i32) {
    %c0_i32 = arith.constant 0 : i32
    %c0_i32_0 = arith.constant 0 : i32
    %c0_i32_1 = arith.constant 0 : i32
    return %c0_i32, %c0_i32_0 : i32, i32
  }
  func.func @transform_5(%arg0: i32, %arg1: memref<1xi32, #tpu.memory_space<smem>>) -> (i32, i32) {
    %c0_i32 = arith.constant 0 : i32
    %c0_i32_0 = arith.constant 0 : i32
    %c0_i32_1 = arith.constant 0 : i32
    return %c0_i32, %c0_i32_0 : i32, i32
  }
  func.func @transform_6(%arg0: i32, %arg1: memref<1xi32, #tpu.memory_space<smem>>) -> (i32, i32) {
    %c0_i32 = arith.constant 0 : i32
    %c0_i32_0 = arith.constant 0 : i32
    %c0_i32_1 = arith.constant 0 : i32
    return %c0_i32, %c0_i32_0 : i32, i32
  }
}

</mosaic_0001>

<llo_original>
// kernel: tpu_custom_call.1
$region0: #{tpu_custom_call.1}
  #allocation0 [shape = 'u32[]', space=smem, size = 0x4, offset = 0x4, fixed_abs, tag = 'smem constant byte address 0x4 - core index']
  #allocation1 [shape = 'u32[72,128]{1,0:T(1,128)}', space=vmem, size = 0x9000, scoped, tag = 'internal scratch']
  #allocation2 [shape = 's32[1]{0}', space=sflag, size = 0x4, scoped, tag = 'scoped memory for tpu_custom_call.1']
  #allocation3 [shape = 's32[1]{0:T(128)S(6)}', space=smem, size = 0x200, scoped, tag = 'prefetched SMEM operand 0']
  %s0 = inlined_call_operand.<no memory space> [shape: s32[1], index: 0, kind: input, shape index: {}]
  %s1 = inlined_call_operand.hbm [shape: f32[16,1,128], index: 1, kind: input, shape index: {}]
  %s2 = inlined_call_operand.hbm [shape: f32[1,128], index: 2, kind: input, shape index: {}]
  %s3 = inlined_call_operand.hbm [shape: f32[128,384], index: 3, kind: input, shape index: {}]
  %s4 = inlined_call_operand.hbm [shape: f32[128,384], index: 4, kind: input, shape index: {}]
  %s5 = inlined_call_operand.vmem [shape: f32[1,384], index: 5, kind: input, shape index: {}]
  %s6 = inlined_call_operand.vmem [shape: f32[1,384], index: 6, kind: input, shape index: {}]
  %s7 = inlined_call_operand.hbm [shape: f32[1,128], index: 7, kind: output, shape index: {}]
  %s8 = sld [smem:[#allocation0]]
  $region50: #{tpu_custom_call.1} parent=0
    _
  %s10 = ssub.s32 1, %s8
  %s11 = scalar_select 0, %s10, %s8
  %12 = sst [smem:[#allocation3]] %s0
  $region1: #{tpu_custom_call.1} parent=0
    #allocation4 [shape = 'u8[8192]{0}', space=vmem, size = 0x2000, scoped, tag = 'input window, operand 1, single buffered']
    #allocation5 [shape = 's32[1]{0}', space=sflag, size = 0x4, scoped, tag = 'scoped memory for tpu_custom_call.1']
    #allocation6 [shape = 's32[1]{0}', space=sflag, size = 0x4, scoped, tag = 'scoped memory for tpu_custom_call.1']
    #allocation7 [shape = 'u8[512]{0}', space=vmem, size = 0x400, scoped, tag = 'input window, operand 2, single buffered']
    #allocation8 [shape = 's32[1]{0}', space=sflag, size = 0x4, scoped, tag = 'scoped memory for tpu_custom_call.1']
    #allocation9 [shape = 'u8[196608]{0}', space=vmem, size = 0x30000, scoped, tag = 'input window, operand 3, single buffered']
    #allocation10 [shape = 'u8[196608]{0}', space=vmem, size = 0x30000, scoped, tag = 'input window, operand 4, single buffered']
    #allocation11 [shape = 's32[1]{0}', space=sflag, size = 0x4, scoped, tag = 'scoped memory for tpu_custom_call.1']
    #allocation12 [shape = 'u8[512]{0}', space=vmem, size = 0x400, scoped, tag = 'output window, operand 0, single buffered']
    %13 = vsyncpa [#allocation5], 0
    %14 = vsyncpa [#allocation8], 0
    %15 = vsyncpa [#allocation11], 0
    %16 = vsyncpa [#allocation6], 0
    // Predicated region
    $region2: #{tpu_custom_call.1} parent=1 // pred_check
      _
    $region3: #{tpu_custom_call.1} parent=1 // pred_check_branch
      %18 = sbr.rel (0) target = $region5
    $region4: #{tpu_custom_call.1} parent=1 // pred_region
      %20 = vsyncadd [#allocation5], 0
      %s21 = sshll.u32 %s1, 4
      %s22 = int_to_ptr.hbm [resolvable:$true] %s21
      %s23 = sshll.u32 [#allocation4], 4
      %s24 = int_to_ptr.vmem [resolvable:$true] %s23
      %29 = dma.hbm_to_vmem [thread:$0]  %s22, 256, %s24, [#allocation5], 16, 16, 1
    $region5: #{tpu_custom_call.1} parent=1 // pred_fallthru
      _
    // Predicated region
    $region6: #{tpu_custom_call.1} parent=1 // pred_check
      _
    $region7: #{tpu_custom_call.1} parent=1 // pred_check_branch
      %31 = sbr.rel (0) target = $region9
    $region8: #{tpu_custom_call.1} parent=1 // pred_region
      %33 = vsyncadd [#allocation8], 0
      %s35 = sshll.u32 %s2, 4
      %s36 = int_to_ptr.hbm [resolvable:$true] %s35
      %s37 = sshll.u32 [#allocation7], 4
      %s38 = int_to_ptr.vmem [resolvable:$true] %s37
      %40 = dma.hbm_to_vmem [thread:$0]  %s36, 16, %s38, [#allocation8]
    $region9: #{tpu_custom_call.1} parent=1 // pred_fallthru
      _
    // Predicated region
    $region10: #{tpu_custom_call.1} parent=1 // pred_check
      _
    $region11: #{tpu_custom_call.1} parent=1 // pred_check_branch
      %42 = sbr.rel (0) target = $region13
    $region12: #{tpu_custom_call.1} parent=1 // pred_region
      %44 = vsyncadd [#allocation8], 0
      %s45 = sshll.u32 %s3, 4
      %s46 = int_to_ptr.hbm [resolvable:$true] %s45
      %s47 = sshll.u32 [#allocation9], 4
      %s48 = int_to_ptr.vmem [resolvable:$true] %s47
      %53 = dma.hbm_to_vmem [thread:$0]  %s46, 6144, %s48, [#allocation8], 384, 384, 24
    $region13: #{tpu_custom_call.1} parent=1 // pred_fallthru
      _
    // Predicated region
    $region14: #{tpu_custom_call.1} parent=1 // pred_check
      _
    $region15: #{tpu_custom_call.1} parent=1 // pred_check_branch
      %55 = sbr.rel (0) target = $region17
    $region16: #{tpu_custom_call.1} parent=1 // pred_region
      %57 = vsyncadd [#allocation11], 0
      %s58 = sshll.u32 %s4, 4
      %s59 = int_to_ptr.hbm [resolvable:$true] %s58
      %s60 = sshll.u32 [#allocation10], 4
      %s61 = int_to_ptr.vmem [resolvable:$true] %s60
      %66 = dma.hbm_to_vmem [thread:$0]  %s59, 6144, %s61, [#allocation11], 384, 384, 24
    $region17: #{tpu_custom_call.1} parent=1 // pred_fallthru
      _
    // Predicated region
    $region18: #{tpu_custom_call.1} parent=1 // pred_check
      _
    $region19: #{tpu_custom_call.1} parent=1 // pred_check_branch
      %68 = sbr.rel (0) target = $region21
    $region20: #{tpu_custom_call.1} parent=1 // pred_region
      _
    $region21: #{tpu_custom_call.1} parent=1 // pred_fallthru
      _
    // Predicated region
    $region22: #{tpu_custom_call.1} parent=1 // pred_check
      _
    $region23: #{tpu_custom_call.1} parent=1 // pred_check_branch
      %70 = sbr.rel (0) target = $region25
    $region24: #{tpu_custom_call.1} parent=1 // pred_region
      _
    $region25: #{tpu_custom_call.1} parent=1 // pred_fallthru
      _
    // Predicated region
    $region26: #{tpu_custom_call.1} parent=1 // pred_check
      _
    $region27: #{tpu_custom_call.1} parent=1 // pred_check_branch
      %72 = sbr.rel (0) target = $region29
    $region28: #{tpu_custom_call.1} parent=1 // pred_region
      %74 = dma.done [#allocation5], 256
    $region29: #{tpu_custom_call.1} parent=1 // pred_fallthru
      _
    // Predicated region
    $region30: #{tpu_custom_call.1} parent=1 // pred_check
      _
    $region31: #{tpu_custom_call.1} parent=1 // pred_check_branch
      %76 = sbr.rel (0) target = $region33
    $region32: #{tpu_custom_call.1} parent=1 // pred_region
      %78 = dma.done [#allocation8], 16
    $region33: #{tpu_custom_call.1} parent=1 // pred_fallthru
      _
    // Predicated region
    $region34: #{tpu_custom_call.1} parent=1 // pred_check
      _
    $region35: #{tpu_custom_call.1} parent=1 // pred_check_branch
      %80 = sbr.rel (0) target = $region37
    $region36: #{tpu_custom_call.1} parent=1 // pred_region
      %82 = dma.done [#allocation8], 6144
    $region37: #{tpu_custom_call.1} parent=1 // pred_fallthru
      _
    // Predicated region
    $region38: #{tpu_custom_call.1} parent=1 // pred_check
      _
    $region39: #{tpu_custom_call.1} parent=1 // pred_check_branch
      %84 = sbr.rel (0) target = $region41
    $region40: #{tpu_custom_call.1} parent=1 // pred_region
      %86 = dma.done [#allocation11], 6144
    $region41: #{tpu_custom_call.1} parent=1 // pred_fallthru
      _
    %s87 = sld [smem:[#allocation3]]
    %s88 = scalar_lea.vmem [#allocation4], %s87
    %v89 = vld [vmem:[%s88] sm:$0x1]
    %v90 = vld [vmem:[#allocation9] sm:$0xff]
    %v91 = vld [vmem:[#allocation9 + $0x8] sm:$0xff]
    %v92 = vld [vmem:[#allocation9 + $0x10] sm:$0xff]
    %v93 = vld [vmem:[#allocation9 + $0x18] sm:$0xff]
    %v94 = vld [vmem:[#allocation9 + $0x20] sm:$0xff]
    %v95 = vld [vmem:[#allocation9 + $0x28] sm:$0xff]
    %v96 = vld [vmem:[#allocation9 + $0x30] sm:$0xff]
    %v97 = vld [vmem:[#allocation9 + $0x38] sm:$0xff]
    %v98 = vld [vmem:[#allocation9 + $0x40] sm:$0xff]
    %v99 = vld [vmem:[#allocation9 + $0x48] sm:$0xff]
    %v100 = vld [vmem:[#allocation9 + $0x50] sm:$0xff]
    %v101 = vld [vmem:[#allocation9 + $0x58] sm:$0xff]
    %v102 = vld [vmem:[#allocation9 + $0x60] sm:$0xff]
    %v103 = vld [vmem:[#allocation9 + $0x68] sm:$0xff]
    %v104 = vld [vmem:[#allocation9 + $0x70] sm:$0xff]
    %v105 = vld [vmem:[#allocation9 + $0x78] sm:$0xff]
    %v106 = vld [vmem:[#allocation9 + $0x80] sm:$0xff]
    %v107 = vld [vmem:[#allocation9 + $0x88] sm:$0xff]
    %v108 = vld [vmem:[#allocation9 + $0x90] sm:$0xff]
    %v109 = vld [vmem:[#allocation9 + $0x98] sm:$0xff]
    %v110 = vld [vmem:[#allocation9 + $0xa0] sm:$0xff]
    %v111 = vld [vmem:[#allocation9 + $0xa8] sm:$0xff]
    %v112 = vld [vmem:[#allocation9 + $0xb0] sm:$0xff]
    %v113 = vld [vmem:[#allocation9 + $0xb8] sm:$0xff]
    %v114 = vld [vmem:[#allocation9 + $0xc0] sm:$0xff]
    %v115 = vld [vmem:[#allocation9 + $0xc8] sm:$0xff]
    %v116 = vld [vmem:[#allocation9 + $0xd0] sm:$0xff]
    %v117 = vld [vmem:[#allocation9 + $0xd8] sm:$0xff]
    %v118 = vld [vmem:[#allocation9 + $0xe0] sm:$0xff]
    %v119 = vld [vmem:[#allocation9 + $0xe8] sm:$0xff]
    %v120 = vld [vmem:[#allocation9 + $0xf0] sm:$0xff]
    %v121 = vld [vmem:[#allocation9 + $0xf8] sm:$0xff]
    %v122 = vld [vmem:[#allocation9 + $0x100] sm:$0xff]
    %v123 = vld [vmem:[#allocation9 + $0x108] sm:$0xff]
    %v124 = vld [vmem:[#allocation9 + $0x110] sm:$0xff]
    %v125 = vld [vmem:[#allocation9 + $0x118] sm:$0xff]
    %v126 = vld [vmem:[#allocation9 + $0x120] sm:$0xff]
    %v127 = vld [vmem:[#allocation9 + $0x128] sm:$0xff]
    %v128 = vld [vmem:[#allocation9 + $0x130] sm:$0xff]
    %v129 = vld [vmem:[#allocation9 + $0x138] sm:$0xff]
    %v130 = vld [vmem:[#allocation9 + $0x140] sm:$0xff]
    %v131 = vld [vmem:[#allocation9 + $0x148] sm:$0xff]
    %v132 = vld [vmem:[#allocation9 + $0x150] sm:$0xff]
    %v133 = vld [vmem:[#allocation9 + $0x158] sm:$0xff]
    %v134 = vld [vmem:[#allocation9 + $0x160] sm:$0xff]
    %v135 = vld [vmem:[#allocation9 + $0x168] sm:$0xff]
    %v136 = vld [vmem:[#allocation9 + $0x170] sm:$0xff]
    %v137 = vld [vmem:[#allocation9 + $0x178] sm:$0xff]
    %v138 = vld [vmem:[%s5] sm:$0x7]
    %v140 = vperm.slane %v138, 0
    %v141 = vperm.slane %v138, 1
    %v142 = vperm.slane %v138, 2
    %v146 = vand.u32 %v135, 4294901760
    %147 = vmatpush.msra.mxu0 %v146
    %v148 = vand.u32 %v132, 4294901760
    %149 = vmatpush.msra.mxu0 %v148
    %v150 = vand.u32 %v129, 4294901760
    %151 = vmatpush.msra.mxu0 %v150
    %v152 = vand.u32 %v126, 4294901760
    %153 = vmatpush.msra.mxu0 %v152
    %v154 = vand.u32 %v123, 4294901760
    %155 = vmatpush.msra.mxu0 %v154
    %v156 = vand.u32 %v120, 4294901760
    %157 = vmatpush.msra.mxu0 %v156
    %v158 = vand.u32 %v117, 4294901760
    %159 = vmatpush.msra.mxu0 %v158
    %v160 = vand.u32 %v114, 4294901760
    %161 = vmatpush.msra.mxu0 %v160
    %v162 = vand.u32 %v111, 4294901760
    %163 = vmatpush.msra.mxu0 %v162
    %v164 = vand.u32 %v108, 4294901760
    %165 = vmatpush.msra.mxu0 %v164
    %v166 = vand.u32 %v105, 4294901760
    %167 = vmatpush.msra.mxu0 %v166
    %v168 = vand.u32 %v102, 4294901760
    %169 = vmatpush.msra.mxu0 %v168
    %v170 = vand.u32 %v99, 4294901760
    %171 = vmatpush.msra.mxu0 %v170
    %v172 = vand.u32 %v96, 4294901760
    %173 = vmatpush.msra.mxu0 %v172
    %v174 = vand.u32 %v93, 4294901760
    %175 = vmatpush.msra.mxu0 %v174
    %v176 = vand.u32 %v90, 4294901760
    %177 = vmatpush.msra.mxu0 %v176
    %v178 = vand.u32 %v89, 4294901760
    %v179 = vsub.f32 %v89, %v178
    %v180 = vand.u32 %v179, 4294901760
    %v181 = vsub.f32 %v179, %v180
    %v182 = vand.u32 %v181, 4294901760
    %183 = vmatmul.f32.gmra.mxu0 %v182
    %v184 = vpop.f32.mrf.mxu0
    %v185 = vadd.f32 %v140, %v184
    %186 = vdwg.mxu0
    %v187 = vand.u32 %v135, 4294901760
    %v188 = vsub.f32 %v135, %v187
    %v189 = vand.u32 %v188, 4294901760
    %v190 = vsub.f32 %v188, %v189
    %v191 = vand.u32 %v190, 4294901760
    %192 = vmatpush.msra.mxu0 %v191
    %v193 = vand.u32 %v132, 4294901760
    %v194 = vsub.f32 %v132, %v193
    %v195 = vand.u32 %v194, 4294901760
    %v196 = vsub.f32 %v194, %v195
    %v197 = vand.u32 %v196, 4294901760
    %198 = vmatpush.msra.mxu0 %v197
    %v199 = vand.u32 %v129, 4294901760
    %v200 = vsub.f32 %v129, %v199
    %v201 = vand.u32 %v200, 4294901760
    %v202 = vsub.f32 %v200, %v201
    %v203 = vand.u32 %v202, 4294901760
    %204 = vmatpush.msra.mxu0 %v203
    %v205 = vand.u32 %v126, 4294901760
    %v206 = vsub.f32 %v126, %v205
    %v207 = vand.u32 %v206, 4294901760
    %v208 = vsub.f32 %v206, %v207
    %v209 = vand.u32 %v208, 4294901760
    %210 = vmatpush.msra.mxu0 %v209
    %v211 = vand.u32 %v123, 4294901760
    %v212 = vsub.f32 %v123, %v211
    %v213 = vand.u32 %v212, 4294901760
    %v214 = vsub.f32 %v212, %v213
    %v215 = vand.u32 %v214, 4294901760
    %216 = vmatpush.msra.mxu0 %v215
    %v217 = vand.u32 %v120, 4294901760
    %v218 = vsub.f32 %v120, %v217
    %v219 = vand.u32 %v218, 4294901760
    %v220 = vsub.f32 %v218, %v219
    %v221 = vand.u32 %v220, 4294901760
    %222 = vmatpush.msra.mxu0 %v221
    %v223 = vand.u32 %v117, 4294901760
    %v224 = vsub.f32 %v117, %v223
    %v225 = vand.u32 %v224, 4294901760
    %v226 = vsub.f32 %v224, %v225
    %v227 = vand.u32 %v226, 4294901760
    %228 = vmatpush.msra.mxu0 %v227
    %v229 = vand.u32 %v114, 4294901760
    %v230 = vsub.f32 %v114, %v229
    %v231 = vand.u32 %v230, 4294901760
    %v232 = vsub.f32 %v230, %v231
    %v233 = vand.u32 %v232, 4294901760
    %234 = vmatpush.msra.mxu0 %v233
    %v235 = vand.u32 %v111, 4294901760
    %v236 = vsub.f32 %v111, %v235
    %v237 = vand.u32 %v236, 4294901760
    %v238 = vsub.f32 %v236, %v237
    %v239 = vand.u32 %v238, 4294901760
    %240 = vmatpush.msra.mxu0 %v239
    %v241 = vand.u32 %v108, 4294901760
    %v242 = vsub.f32 %v108, %v241
    %v243 = vand.u32 %v242, 4294901760
    %v244 = vsub.f32 %v242, %v243
    %v245 = vand.u32 %v244, 4294901760
    %246 = vmatpush.msra.mxu0 %v245
    %v247 = vand.u32 %v105, 4294901760
    %v248 = vsub.f32 %v105, %v247
    %v249 = vand.u32 %v248, 4294901760
    %v250 = vsub.f32 %v248, %v249
    %v251 = vand.u32 %v250, 4294901760
    %252 = vmatpush.msra.mxu0 %v251
    %v253 = vand.u32 %v102, 4294901760
    %v254 = vsub.f32 %v102, %v253
    %v255 = vand.u32 %v254, 4294901760
    %v256 = vsub.f32 %v254, %v255
    %v257 = vand.u32 %v256, 4294901760
    %258 = vmatpush.msra.mxu0 %v257
    %v259 = vand.u32 %v99, 4294901760
    %v260 = vsub.f32 %v99, %v259
    %v261 = vand.u32 %v260, 4294901760
    %v262 = vsub.f32 %v260, %v261
    %v263 = vand.u32 %v262, 4294901760
    %264 = vmatpush.msra.mxu0 %v263
    %v265 = vand.u32 %v96, 4294901760
    %v266 = vsub.f32 %v96, %v265
    %v267 = vand.u32 %v266, 4294901760
    %v268 = vsub.f32 %v266, %v267
    %v269 = vand.u32 %v268, 4294901760
    %270 = vmatpush.msra.mxu0 %v269
    %v271 = vand.u32 %v93, 4294901760
    %v272 = vsub.f32 %v93, %v271
    %v273 = vand.u32 %v272, 4294901760
    %v274 = vsub.f32 %v272, %v273
    %v275 = vand.u32 %v274, 4294901760
    %276 = vmatpush.msra.mxu0 %v275
    %v277 = vand.u32 %v90, 4294901760
    %v278 = vsub.f32 %v90, %v277
    %v279 = vand.u32 %v278, 4294901760
    %v280 = vsub.f32 %v278, %v279
    %v281 = vand.u32 %v280, 4294901760
    %282 = vmatpush.msra.mxu0 %v281
    %v283 = vand.u32 %v89, 4294901760
    %284 = vmatmul.f32.gmra.mxu0 %v283
    %v285 = vpop.f32.mrf.mxu0
    %v286 = vadd.f32 %v185, %v285
    %287 = vdwg.mxu0
    %v288 = vand.u32 %v135, 4294901760
    %v289 = vsub.f32 %v135, %v288
    %290 = vmatpush.msra.mxu0 %v289
    %v291 = vand.u32 %v132, 4294901760
    %v292 = vsub.f32 %v132, %v291
    %293 = vmatpush.msra.mxu0 %v292
    %v294 = vand.u32 %v129, 4294901760
    %v295 = vsub.f32 %v129, %v294
    %296 = vmatpush.msra.mxu0 %v295
    %v297 = vand.u32 %v126, 4294901760
    %v298 = vsub.f32 %v126, %v297
    %299 = vmatpush.msra.mxu0 %v298
    %v300 = vand.u32 %v123, 4294901760
    %v301 = vsub.f32 %v123, %v300
    %302 = vmatpush.msra.mxu0 %v301
    %v303 = vand.u32 %v120, 4294901760
    %v304 = vsub.f32 %v120, %v303
    %305 = vmatpush.msra.mxu0 %v304
    %v306 = vand.u32 %v117, 4294901760
    %v307 = vsub.f32 %v117, %v306
    %308 = vmatpush.msra.mxu0 %v307
    %v309 = vand.u32 %v114, 4294901760
    %v310 = vsub.f32 %v114, %v309
    %311 = vmatpush.msra.mxu0 %v310
    %v312 = vand.u32 %v111, 4294901760
    %v313 = vsub.f32 %v111, %v312
    %314 = vmatpush.msra.mxu0 %v313
    %v315 = vand.u32 %v108, 4294901760
    %v316 = vsub.f32 %v108, %v315
    %317 = vmatpush.msra.mxu0 %v316
    %v318 = vand.u32 %v105, 4294901760
    %v319 = vsub.f32 %v105, %v318
    %320 = vmatpush.msra.mxu0 %v319
    %v321 = vand.u32 %v102, 4294901760
    %v322 = vsub.f32 %v102, %v321
    %323 = vmatpush.msra.mxu0 %v322
    %v324 = vand.u32 %v99, 4294901760
    %v325 = vsub.f32 %v99, %v324
    %326 = vmatpush.msra.mxu0 %v325
    %v327 = vand.u32 %v96, 4294901760
    %v328 = vsub.f32 %v96, %v327
    %329 = vmatpush.msra.mxu0 %v328
    %v330 = vand.u32 %v93, 4294901760
    %v331 = vsub.f32 %v93, %v330
    %332 = vmatpush.msra.mxu0 %v331
    %v333 = vand.u32 %v90, 4294901760
    %v334 = vsub.f32 %v90, %v333
    %335 = vmatpush.msra.mxu0 %v334
    %v336 = vand.u32 %v89, 4294901760
    %v337 = vsub.f32 %v89, %v336
    %338 = vmatmul.f32.gmra.mxu0 %v337
    %v339 = vpop.f32.mrf.mxu0
    %v340 = vadd.f32 %v286, %v339
    %341 = vdwg.mxu0
    %v342 = vand.u32 %v135, 4294901760
    %343 = vmatpush.msra.mxu0 %v342
    %v344 = vand.u32 %v132, 4294901760
    %345 = vmatpush.msra.mxu0 %v344
    %v346 = vand.u32 %v129, 4294901760
    %347 = vmatpush.msra.mxu0 %v346
    %v348 = vand.u32 %v126, 4294901760
    %349 = vmatpush.msra.mxu0 %v348
    %v350 = vand.u32 %v123, 4294901760
    %351 = vmatpush.msra.mxu0 %v350
    %v352 = vand.u32 %v120, 4294901760
    %353 = vmatpush.msra.mxu0 %v352
    %v354 = vand.u32 %v117, 4294901760
    %355 = vmatpush.msra.mxu0 %v354
    %v356 = vand.u32 %v114, 4294901760
    %357 = vmatpush.msra.mxu0 %v356
    %v358 = vand.u32 %v111, 4294901760
    %359 = vmatpush.msra.mxu0 %v358
    %v360 = vand.u32 %v108, 4294901760
    %361 = vmatpush.msra.mxu0 %v360
    %v362 = vand.u32 %v105, 4294901760
    %363 = vmatpush.msra.mxu0 %v362
    %v364 = vand.u32 %v102, 4294901760
    %365 = vmatpush.msra.mxu0 %v364
    %v366 = vand.u32 %v99, 4294901760
    %367 = vmatpush.msra.mxu0 %v366
    %v368 = vand.u32 %v96, 4294901760
    %369 = vmatpush.msra.mxu0 %v368
    %v370 = vand.u32 %v93, 4294901760
    %371 = vmatpush.msra.mxu0 %v370
    %v372 = vand.u32 %v90, 4294901760
    %373 = vmatpush.msra.mxu0 %v372
    %v374 = vand.u32 %v89, 4294901760
    %v375 = vsub.f32 %v89, %v374
    %v376 = vand.u32 %v375, 4294901760
    %377 = vmatmul.f32.gmra.mxu0 %v376
    %v378 = vpop.f32.mrf.mxu0
    %v379 = vadd.f32 %v340, %v378
    %380 = vdwg.mxu0
    %v381 = vand.u32 %v135, 4294901760
    %v382 = vsub.f32 %v135, %v381
    %v383 = vand.u32 %v382, 4294901760
    %384 = vmatpush.msra.mxu0 %v383
    %v385 = vand.u32 %v132, 4294901760
    %v386 = vsub.f32 %v132, %v385
    %v387 = vand.u32 %v386, 4294901760
    %388 = vmatpush.msra.mxu0 %v387
    %v389 = vand.u32 %v129, 4294901760
    %v390 = vsub.f32 %v129, %v389
    %v391 = vand.u32 %v390, 4294901760
    %392 = vmatpush.msra.mxu0 %v391
    %v393 = vand.u32 %v126, 4294901760
    %v394 = vsub.f32 %v126, %v393
    %v395 = vand.u32 %v394, 4294901760
    %396 = vmatpush.msra.mxu0 %v395
    %v397 = vand.u32 %v123, 4294901760
    %v398 = vsub.f32 %v123, %v397
    %v399 = vand.u32 %v398, 4294901760
    %400 = vmatpush.msra.mxu0 %v399
    %v401 = vand.u32 %v120, 4294901760
    %v402 = vsub.f32 %v120, %v401
    %v403 = vand.u32 %v402, 4294901760
    %404 = vmatpush.msra.mxu0 %v403
    %v405 = vand.u32 %v117, 4294901760
    %v406 = vsub.f32 %v117, %v405
    %v407 = vand.u32 %v406, 4294901760
    %408 = vmatpush.msra.mxu0 %v407
    %v409 = vand.u32 %v114, 4294901760
    %v410 = vsub.f32 %v114, %v409
    %v411 = vand.u32 %v410, 4294901760
    %412 = vmatpush.msra.mxu0 %v411
    %v413 = vand.u32 %v111, 4294901760
    %v414 = vsub.f32 %v111, %v413
    %v415 = vand.u32 %v414, 4294901760
    %416 = vmatpush.msra.mxu0 %v415
    %v417 = vand.u32 %v108, 4294901760
    %v418 = vsub.f32 %v108, %v417
    %v419 = vand.u32 %v418, 4294901760
    %420 = vmatpush.msra.mxu0 %v419
    %v421 = vand.u32 %v105, 4294901760
    %v422 = vsub.f32 %v105, %v421
    %v423 = vand.u32 %v422, 4294901760
    %424 = vmatpush.msra.mxu0 %v423
    %v425 = vand.u32 %v102, 4294901760
    %v426 = vsub.f32 %v102, %v425
    %v427 = vand.u32 %v426, 4294901760
    %428 = vmatpush.msra.mxu0 %v427
    %v429 = vand.u32 %v99, 4294901760
    %v430 = vsub.f32 %v99, %v429
    %v431 = vand.u32 %v430, 4294901760
    %432 = vmatpush.msra.mxu0 %v431
    %v433 = vand.u32 %v96, 4294901760
    %v434 = vsub.f32 %v96, %v433
    %v435 = vand.u32 %v434, 4294901760
    %436 = vmatpush.msra.mxu0 %v435
    %v437 = vand.u32 %v93, 4294901760
    %v438 = vsub.f32 %v93, %v437
    %v439 = vand.u32 %v438, 4294901760
    %440 = vmatpush.msra.mxu0 %v439
    %v441 = vand.u32 %v90, 4294901760
    %v442 = vsub.f32 %v90, %v441
    %v443 = vand.u32 %v442, 4294901760
    %444 = vmatpush.msra.mxu0 %v443
    %v445 = vand.u32 %v89, 4294901760
    %446 = vmatmul.f32.gmra.mxu0 %v445
    %v447 = vpop.f32.mrf.mxu0
    %v448 = vadd.f32 %v379, %v447
    %449 = vdwg.mxu0
    %v450 = vand.u32 %v135, 4294901760
    %451 = vmatpush.msra.mxu0 %v450
    %v452 = vand.u32 %v132, 4294901760
    %453 = vmatpush.msra.mxu0 %v452
    %v454 = vand.u32 %v129, 4294901760
    %455 = vmatpush.msra.mxu0 %v454
    %v456 = vand.u32 %v126, 4294901760
    %457 = vmatpush.msra.mxu0 %v456
    %v458 = vand.u32 %v123, 4294901760
    %459 = vmatpush.msra.mxu0 %v458
    %v460 = vand.u32 %v120, 4294901760
    %461 = vmatpush.msra.mxu0 %v460
    %v462 = vand.u32 %v117, 4294901760
    %463 = vmatpush.msra.mxu0 %v462
    %v464 = vand.u32 %v114, 4294901760
    %465 = vmatpush.msra.mxu0 %v464
    %v466 = vand.u32 %v111, 4294901760
    %467 = vmatpush.msra.mxu0 %v466
    %v468 = vand.u32 %v108, 4294901760
    %469 = vmatpush.msra.mxu0 %v468
    %v470 = vand.u32 %v105, 4294901760
    %471 = vmatpush.msra.mxu0 %v470
    %v472 = vand.u32 %v102, 4294901760
    %473 = vmatpush.msra.mxu0 %v472
    %v474 = vand.u32 %v99, 4294901760
    %475 = vmatpush.msra.mxu0 %v474
    %v476 = vand.u32 %v96, 4294901760
    %477 = vmatpush.msra.mxu0 %v476
    %v478 = vand.u32 %v93, 4294901760
    %479 = vmatpush.msra.mxu0 %v478
    %v480 = vand.u32 %v90, 4294901760
    %481 = vmatpush.msra.mxu0 %v480
    %v482 = vand.u32 %v89, 4294901760
    %483 = vmatmul.f32.gmra.mxu0 %v482
    %v484 = vpop.f32.mrf.mxu0
    %v485 = vadd.f32 %v448, %v484
    %486 = vdwg.mxu0
    %v487 = vand.u32 %v136, 4294901760
    %488 = vmatpush.msra.mxu0 %v487
    %v489 = vand.u32 %v133, 4294901760
    %490 = vmatpush.msra.mxu0 %v489
    %v491 = vand.u32 %v130, 4294901760
    %492 = vmatpush.msra.mxu0 %v491
    %v493 = vand.u32 %v127, 4294901760
    %494 = vmatpush.msra.mxu0 %v493
    %v495 = vand.u32 %v124, 4294901760
    %496 = vmatpush.msra.mxu0 %v495
    %v497 = vand.u32 %v121, 4294901760
    %498 = vmatpush.msra.mxu0 %v497
    %v499 = vand.u32 %v118, 4294901760
    %500 = vmatpush.msra.mxu0 %v499
    %v501 = vand.u32 %v115, 4294901760
    %502 = vmatpush.msra.mxu0 %v501
    %v503 = vand.u32 %v112, 4294901760
    %504 = vmatpush.msra.mxu0 %v503
    %v505 = vand.u32 %v109, 4294901760
    %506 = vmatpush.msra.mxu0 %v505
    %v507 = vand.u32 %v106, 4294901760
    %508 = vmatpush.msra.mxu0 %v507
    %v509 = vand.u32 %v103, 4294901760
    %510 = vmatpush.msra.mxu0 %v509
    %v511 = vand.u32 %v100, 4294901760
    %512 = vmatpush.msra.mxu0 %v511
    %v513 = vand.u32 %v97, 4294901760
    %514 = vmatpush.msra.mxu0 %v513
    %v515 = vand.u32 %v94, 4294901760
    %516 = vmatpush.msra.mxu0 %v515
    %v517 = vand.u32 %v91, 4294901760
    %518 = vmatpush.msra.mxu0 %v517
    %v519 = vand.u32 %v89, 4294901760
    %v520 = vsub.f32 %v89, %v519
    %v521 = vand.u32 %v520, 4294901760
    %v522 = vsub.f32 %v520, %v521
    %v523 = vand.u32 %v522, 4294901760
    %524 = vmatmul.f32.gmra.mxu0 %v523
    %v525 = vpop.f32.mrf.mxu0
    %v526 = vadd.f32 %v141, %v525
    %527 = vdwg.mxu0
    %v528 = vand.u32 %v136, 4294901760
    %v529 = vsub.f32 %v136, %v528
    %v530 = vand.u32 %v529, 4294901760
    %v531 = vsub.f32 %v529, %v530
    %v532 = vand.u32 %v531, 4294901760
    %533 = vmatpush.msra.mxu0 %v532
    %v534 = vand.u32 %v133, 4294901760
    %v535 = vsub.f32 %v133, %v534
    %v536 = vand.u32 %v535, 4294901760
    %v537 = vsub.f32 %v535, %v536
    %v538 = vand.u32 %v537, 4294901760
    %539 = vmatpush.msra.mxu0 %v538
    %v540 = vand.u32 %v130, 4294901760
    %v541 = vsub.f32 %v130, %v540
    %v542 = vand.u32 %v541, 4294901760
    %v543 = vsub.f32 %v541, %v542
    %v544 = vand.u32 %v543, 4294901760
    %545 = vmatpush.msra.mxu0 %v544
    %v546 = vand.u32 %v127, 4294901760
    %v547 = vsub.f32 %v127, %v546
    %v548 = vand.u32 %v547, 4294901760
    %v549 = vsub.f32 %v547, %v548
    %v550 = vand.u32 %v549, 4294901760
    %551 = vmatpush.msra.mxu0 %v550
    %v552 = vand.u32 %v124, 4294901760
    %v553 = vsub.f32 %v124, %v552
    %v554 = vand.u32 %v553, 4294901760
    %v555 = vsub.f32 %v553, %v554
    %v556 = vand.u32 %v555, 4294901760
    %557 = vmatpush.msra.mxu0 %v556
    %v558 = vand.u32 %v121, 4294901760
    %v559 = vsub.f32 %v121, %v558
    %v560 = vand.u32 %v559, 4294901760
    %v561 = vsub.f32 %v559, %v560
    %v562 = vand.u32 %v561, 4294901760
    %563 = vmatpush.msra.mxu0 %v562
    %v564 = vand.u32 %v118, 4294901760
    %v565 = vsub.f32 %v118, %v564
    %v566 = vand.u32 %v565, 4294901760
    %v567 = vsub.f32 %v565, %v566
    %v568 = vand.u32 %v567, 4294901760
    %569 = vmatpush.msra.mxu0 %v568
    %v570 = vand.u32 %v115, 4294901760
    %v571 = vsub.f32 %v115, %v570
    %v572 = vand.u32 %v571, 4294901760
    %v573 = vsub.f32 %v571, %v572
    %v574 = vand.u32 %v573, 4294901760
    %575 = vmatpush.msra.mxu0 %v574
    %v576 = vand.u32 %v112, 4294901760
    %v577 = vsub.f32 %v112, %v576
    %v578 = vand.u32 %v577, 4294901760
    %v579 = vsub.f32 %v577, %v578
    %v580 = vand.u32 %v579, 4294901760
    %581 = vmatpush.msra.mxu0 %v580
    %v582 = vand.u32 %v109, 4294901760
    %v583 = vsub.f32 %v109, %v582
    %v584 = vand.u32 %v583, 4294901760
    %v585 = vsub.f32 %v583, %v584
    %v586 = vand.u32 %v585, 4294901760
    %587 = vmatpush.msra.mxu0 %v586
    %v588 = vand.u32 %v106, 4294901760
    %v589 = vsub.f32 %v106, %v588
    %v590 = vand.u32 %v589, 4294901760
    %v591 = vsub.f32 %v589, %v590
    %v592 = vand.u32 %v591, 4294901760
    %593 = vmatpush.msra.mxu0 %v592
    %v594 = vand.u32 %v103, 4294901760
    %v595 = vsub.f32 %v103, %v594
    %v596 = vand.u32 %v595, 4294901760
    %v597 = vsub.f32 %v595, %v596
    %v598 = vand.u32 %v597, 4294901760
    %599 = vmatpush.msra.mxu0 %v598
    %v600 = vand.u32 %v100, 4294901760
    %v601 = vsub.f32 %v100, %v600
    %v602 = vand.u32 %v601, 4294901760
    %v603 = vsub.f32 %v601, %v602
    %v604 = vand.u32 %v603, 4294901760
    %605 = vmatpush.msra.mxu0 %v604
    %v606 = vand.u32 %v97, 4294901760
    %v607 = vsub.f32 %v97, %v606
    %v608 = vand.u32 %v607, 4294901760
    %v609 = vsub.f32 %v607, %v608
    %v610 = vand.u32 %v609, 4294901760
    %611 = vmatpush.msra.mxu0 %v610
    %v612 = vand.u32 %v94, 4294901760
    %v613 = vsub.f32 %v94, %v612
    %v614 = vand.u32 %v613, 4294901760
    %v615 = vsub.f32 %v613, %v614
    %v616 = vand.u32 %v615, 4294901760
    %617 = vmatpush.msra.mxu0 %v616
    %v618 = vand.u32 %v91, 4294901760
    %v619 = vsub.f32 %v91, %v618
    %v620 = vand.u32 %v619, 4294901760
    %v621 = vsub.f32 %v619, %v620
    %v622 = vand.u32 %v621, 4294901760
    %623 = vmatpush.msra.mxu0 %v622
    %v624 = vand.u32 %v89, 4294901760
    %625 = vmatmul.f32.gmra.mxu0 %v624
    %v626 = vpop.f32.mrf.mxu0
    %v627 = vadd.f32 %v526, %v626
    %628 = vdwg.mxu0
    %v629 = vand.u32 %v136, 4294901760
    %v630 = vsub.f32 %v136, %v629
    %631 = vmatpush.msra.mxu0 %v630
    %v632 = vand.u32 %v133, 4294901760
    %v633 = vsub.f32 %v133, %v632
    %634 = vmatpush.msra.mxu0 %v633
    %v635 = vand.u32 %v130, 4294901760
    %v636 = vsub.f32 %v130, %v635
    %637 = vmatpush.msra.mxu0 %v636
    %v638 = vand.u32 %v127, 4294901760
    %v639 = vsub.f32 %v127, %v638
    %640 = vmatpush.msra.mxu0 %v639
    %v641 = vand.u32 %v124, 4294901760
    %v642 = vsub.f32 %v124, %v641
    %643 = vmatpush.msra.mxu0 %v642
    %v644 = vand.u32 %v121, 4294901760
    %v645 = vsub.f32 %v121, %v644
    %646 = vmatpush.msra.mxu0 %v645
    %v647 = vand.u32 %v118, 4294901760
    %v648 = vsub.f32 %v118, %v647
    %649 = vmatpush.msra.mxu0 %v648
    %v650 = vand.u32 %v115, 4294901760
    %v651 = vsub.f32 %v115, %v650
    %652 = vmatpush.msra.mxu0 %v651
    %v653 = vand.u32 %v112, 4294901760
    %v654 = vsub.f32 %v112, %v653
    %655 = vmatpush.msra.mxu0 %v654
    %v656 = vand.u32 %v109, 4294901760
    %v657 = vsub.f32 %v109, %v656
    %658 = vmatpush.msra.mxu0 %v657
    %v659 = vand.u32 %v106, 4294901760
    %v660 = vsub.f32 %v106, %v659
    %661 = vmatpush.msra.mxu0 %v660
    %v662 = vand.u32 %v103, 4294901760
    %v663 = vsub.f32 %v103, %v662
    %664 = vmatpush.msra.mxu0 %v663
    %v665 = vand.u32 %v100, 4294901760
    %v666 = vsub.f32 %v100, %v665
    %667 = vmatpush.msra.mxu0 %v666
    %v668 = vand.u32 %v97, 4294901760
    %v669 = vsub.f32 %v97, %v668
    %670 = vmatpush.msra.mxu0 %v669
    %v671 = vand.u32 %v94, 4294901760
    %v672 = vsub.f32 %v94, %v671
    %673 = vmatpush.msra.mxu0 %v672
    %v674 = vand.u32 %v91, 4294901760
    %v675 = vsub.f32 %v91, %v674
    %676 = vmatpush.msra.mxu0 %v675
    %v677 = vand.u32 %v89, 4294901760
    %v678 = vsub.f32 %v89, %v677
    %679 = vmatmul.f32.gmra.mxu0 %v678
    %v680 = vpop.f32.mrf.mxu0
    %v681 = vadd.f32 %v627, %v680
    %682 = vdwg.mxu0
    %v683 = vand.u32 %v136, 4294901760
    %684 = vmatpush.msra.mxu0 %v683
    %v685 = vand.u32 %v133, 4294901760
    %686 = vmatpush.msra.mxu0 %v685
    %v687 = vand.u32 %v130, 4294901760
    %688 = vmatpush.msra.mxu0 %v687
    %v689 = vand.u32 %v127, 4294901760
    %690 = vmatpush.msra.mxu0 %v689
    %v691 = vand.u32 %v124, 4294901760
    %692 = vmatpush.msra.mxu0 %v691
    %v693 = vand.u32 %v121, 4294901760
    %694 = vmatpush.msra.mxu0 %v693
    %v695 = vand.u32 %v118, 4294901760
    %696 = vmatpush.msra.mxu0 %v695
    %v697 = vand.u32 %v115, 4294901760
    %698 = vmatpush.msra.mxu0 %v697
    %v699 = vand.u32 %v112, 4294901760
    %700 = vmatpush.msra.mxu0 %v699
    %v701 = vand.u32 %v109, 4294901760
    %702 = vmatpush.msra.mxu0 %v701
    %v703 = vand.u32 %v106, 4294901760
    %704 = vmatpush.msra.mxu0 %v703
    %v705 = vand.u32 %v103, 4294901760
    %706 = vmatpush.msra.mxu0 %v705
    %v707 = vand.u32 %v100, 4294901760
    %708 = vmatpush.msra.mxu0 %v707
    %v709 = vand.u32 %v97, 4294901760
    %710 = vmatpush.msra.mxu0 %v709
    %v711 = vand.u32 %v94, 4294901760
    %712 = vmatpush.msra.mxu0 %v711
    %v713 = vand.u32 %v91, 4294901760
    %714 = vmatpush.msra.mxu0 %v713
    %v715 = vand.u32 %v89, 4294901760
    %v716 = vsub.f32 %v89, %v715
    %v717 = vand.u32 %v716, 4294901760
    %718 = vmatmul.f32.gmra.mxu0 %v717
    %v719 = vpop.f32.mrf.mxu0
    %v720 = vadd.f32 %v681, %v719
    %721 = vdwg.mxu0
    %v722 = vand.u32 %v136, 4294901760
    %v723 = vsub.f32 %v136, %v722
    %v724 = vand.u32 %v723, 4294901760
    %725 = vmatpush.msra.mxu0 %v724
    %v726 = vand.u32 %v133, 4294901760
    %v727 = vsub.f32 %v133, %v726
    %v728 = vand.u32 %v727, 4294901760
    %729 = vmatpush.msra.mxu0 %v728
    %v730 = vand.u32 %v130, 4294901760
    %v731 = vsub.f32 %v130, %v730
    %v732 = vand.u32 %v731, 4294901760
    %733 = vmatpush.msra.mxu0 %v732
    %v734 = vand.u32 %v127, 4294901760
    %v735 = vsub.f32 %v127, %v734
    %v736 = vand.u32 %v735, 4294901760
    %737 = vmatpush.msra.mxu0 %v736
    %v738 = vand.u32 %v124, 4294901760
    %v739 = vsub.f32 %v124, %v738
    %v740 = vand.u32 %v739, 4294901760
    %741 = vmatpush.msra.mxu0 %v740
    %v742 = vand.u32 %v121, 4294901760
    %v743 = vsub.f32 %v121, %v742
    %v744 = vand.u32 %v743, 4294901760
    %745 = vmatpush.msra.mxu0 %v744
    %v746 = vand.u32 %v118, 4294901760
    %v747 = vsub.f32 %v118, %v746
    %v748 = vand.u32 %v747, 4294901760
    %749 = vmatpush.msra.mxu0 %v748
    %v750 = vand.u32 %v115, 4294901760
    %v751 = vsub.f32 %v115, %v750
    %v752 = vand.u32 %v751, 4294901760
    %753 = vmatpush.msra.mxu0 %v752
    %v754 = vand.u32 %v112, 4294901760
    %v755 = vsub.f32 %v112, %v754
    %v756 = vand.u32 %v755, 4294901760
    %757 = vmatpush.msra.mxu0 %v756
    %v758 = vand.u32 %v109, 4294901760
    %v759 = vsub.f32 %v109, %v758
    %v760 = vand.u32 %v759, 4294901760
    %761 = vmatpush.msra.mxu0 %v760
    %v762 = vand.u32 %v106, 4294901760
    %v763 = vsub.f32 %v106, %v762
    %v764 = vand.u32 %v763, 4294901760
    %765 = vmatpush.msra.mxu0 %v764
    %v766 = vand.u32 %v103, 4294901760
    %v767 = vsub.f32 %v103, %v766
    %v768 = vand.u32 %v767, 4294901760
    %769 = vmatpush.msra.mxu0 %v768
    %v770 = vand.u32 %v100, 4294901760
    %v771 = vsub.f32 %v100, %v770
    %v772 = vand.u32 %v771, 4294901760
    %773 = vmatpush.msra.mxu0 %v772
    %v774 = vand.u32 %v97, 4294901760
    %v775 = vsub.f32 %v97, %v774
    %v776 = vand.u32 %v775, 4294901760
    %777 = vmatpush.msra.mxu0 %v776
    %v778 = vand.u32 %v94, 4294901760
    %v779 = vsub.f32 %v94, %v778
    %v780 = vand.u32 %v779, 4294901760
    %781 = vmatpush.msra.mxu0 %v780
    %v782 = vand.u32 %v91, 4294901760
    %v783 = vsub.f32 %v91, %v782
    %v784 = vand.u32 %v783, 4294901760
    %785 = vmatpush.msra.mxu0 %v784
    %v786 = vand.u32 %v89, 4294901760
    %787 = vmatmul.f32.gmra.mxu0 %v786
    %v788 = vpop.f32.mrf.mxu0
    %v789 = vadd.f32 %v720, %v788
    %790 = vdwg.mxu0
    %v791 = vand.u32 %v136, 4294901760
    %792 = vmatpush.msra.mxu0 %v791
    %v793 = vand.u32 %v133, 4294901760
    %794 = vmatpush.msra.mxu0 %v793
    %v795 = vand.u32 %v130, 4294901760
    %796 = vmatpush.msra.mxu0 %v795
    %v797 = vand.u32 %v127, 4294901760
    %798 = vmatpush.msra.mxu0 %v797
    %v799 = vand.u32 %v124, 4294901760
    %800 = vmatpush.msra.mxu0 %v799
    %v801 = vand.u32 %v121, 4294901760
    %802 = vmatpush.msra.mxu0 %v801
    %v803 = vand.u32 %v118, 4294901760
    %804 = vmatpush.msra.mxu0 %v803
    %v805 = vand.u32 %v115, 4294901760
    %806 = vmatpush.msra.mxu0 %v805
    %v807 = vand.u32 %v112, 4294901760
    %808 = vmatpush.msra.mxu0 %v807
    %v809 = vand.u32 %v109, 4294901760
    %810 = vmatpush.msra.mxu0 %v809
    %v811 = vand.u32 %v106, 4294901760
    %812 = vmatpush.msra.mxu0 %v811
    %v813 = vand.u32 %v103, 4294901760
    %814 = vmatpush.msra.mxu0 %v813
    %v815 = vand.u32 %v100, 4294901760
    %816 = vmatpush.msra.mxu0 %v815
    %v817 = vand.u32 %v97, 4294901760
    %818 = vmatpush.msra.mxu0 %v817
    %v819 = vand.u32 %v94, 4294901760
    %820 = vmatpush.msra.mxu0 %v819
    %v821 = vand.u32 %v91, 4294901760
    %822 = vmatpush.msra.mxu0 %v821
    %v823 = vand.u32 %v89, 4294901760
    %824 = vmatmul.f32.gmra.mxu0 %v823
    %v825 = vpop.f32.mrf.mxu0
    %v826 = vadd.f32 %v789, %v825
    %827 = vdwg.mxu0
    %v828 = vand.u32 %v137, 4294901760
    %829 = vmatpush.msra.mxu0 %v828
    %v830 = vand.u32 %v134, 4294901760
    %831 = vmatpush.msra.mxu0 %v830
    %v832 = vand.u32 %v131, 4294901760
    %833 = vmatpush.msra.mxu0 %v832
    %v834 = vand.u32 %v128, 4294901760
    %835 = vmatpush.msra.mxu0 %v834
    %v836 = vand.u32 %v125, 4294901760
    %837 = vmatpush.msra.mxu0 %v836
    %v838 = vand.u32 %v122, 4294901760
    %839 = vmatpush.msra.mxu0 %v838
    %v840 = vand.u32 %v119, 4294901760
    %841 = vmatpush.msra.mxu0 %v840
    %v842 = vand.u32 %v116, 4294901760
    %843 = vmatpush.msra.mxu0 %v842
    %v844 = vand.u32 %v113, 4294901760
    %845 = vmatpush.msra.mxu0 %v844
    %v846 = vand.u32 %v110, 4294901760
    %847 = vmatpush.msra.mxu0 %v846
    %v848 = vand.u32 %v107, 4294901760
    %849 = vmatpush.msra.mxu0 %v848
    %v850 = vand.u32 %v104, 4294901760
    %851 = vmatpush.msra.mxu0 %v850
    %v852 = vand.u32 %v101, 4294901760
    %853 = vmatpush.msra.mxu0 %v852
    %v854 = vand.u32 %v98, 4294901760
    %855 = vmatpush.msra.mxu0 %v854
    %v856 = vand.u32 %v95, 4294901760
    %857 = vmatpush.msra.mxu0 %v856
    %v858 = vand.u32 %v92, 4294901760
    %859 = vmatpush.msra.mxu0 %v858
    %v860 = vand.u32 %v89, 4294901760
    %v861 = vsub.f32 %v89, %v860
    %v862 = vand.u32 %v861, 4294901760
    %v863 = vsub.f32 %v861, %v862
    %v864 = vand.u32 %v863, 4294901760
    %865 = vmatmul.f32.gmra.mxu0 %v864
    %v866 = vpop.f32.mrf.mxu0
    %v867 = vadd.f32 %v142, %v866
    %868 = vdwg.mxu0
    %v869 = vand.u32 %v137, 4294901760
    %v870 = vsub.f32 %v137, %v869
    %v871 = vand.u32 %v870, 4294901760
    %v872 = vsub.f32 %v870, %v871
    %v873 = vand.u32 %v872, 4294901760
    %874 = vmatpush.msra.mxu0 %v873
    %v875 = vand.u32 %v134, 4294901760
    %v876 = vsub.f32 %v134, %v875
    %v877 = vand.u32 %v876, 4294901760
    %v878 = vsub.f32 %v876, %v877
    %v879 = vand.u32 %v878, 4294901760
    %880 = vmatpush.msra.mxu0 %v879
    %v881 = vand.u32 %v131, 4294901760
    %v882 = vsub.f32 %v131, %v881
    %v883 = vand.u32 %v882, 4294901760
    %v884 = vsub.f32 %v882, %v883
    %v885 = vand.u32 %v884, 4294901760
    %886 = vmatpush.msra.mxu0 %v885
    %v887 = vand.u32 %v128, 4294901760
    %v888 = vsub.f32 %v128, %v887
    %v889 = vand.u32 %v888, 4294901760
    %v890 = vsub.f32 %v888, %v889
    %v891 = vand.u32 %v890, 4294901760
    %892 = vmatpush.msra.mxu0 %v891
    %v893 = vand.u32 %v125, 4294901760
    %v894 = vsub.f32 %v125, %v893
    %v895 = vand.u32 %v894, 4294901760
    %v896 = vsub.f32 %v894, %v895
    %v897 = vand.u32 %v896, 4294901760
    %898 = vmatpush.msra.mxu0 %v897
    %v899 = vand.u32 %v122, 4294901760
    %v900 = vsub.f32 %v122, %v899
    %v901 = vand.u32 %v900, 4294901760
    %v902 = vsub.f32 %v900, %v901
    %v903 = vand.u32 %v902, 4294901760
    %904 = vmatpush.msra.mxu0 %v903
    %v905 = vand.u32 %v119, 4294901760
    %v906 = vsub.f32 %v119, %v905
    %v907 = vand.u32 %v906, 4294901760
    %v908 = vsub.f32 %v906, %v907
    %v909 = vand.u32 %v908, 4294901760
    %910 = vmatpush.msra.mxu0 %v909
    %v911 = vand.u32 %v116, 4294901760
    %v912 = vsub.f32 %v116, %v911
    %v913 = vand.u32 %v912, 4294901760
    %v914 = vsub.f32 %v912, %v913
    %v915 = vand.u32 %v914, 4294901760
    %916 = vmatpush.msra.mxu0 %v915
    %v917 = vand.u32 %v113, 4294901760
    %v918 = vsub.f32 %v113, %v917
    %v919 = vand.u32 %v918, 4294901760
    %v920 = vsub.f32 %v918, %v919
    %v921 = vand.u32 %v920, 4294901760
    %922 = vmatpush.msra.mxu0 %v921
    %v923 = vand.u32 %v110, 4294901760
    %v924 = vsub.f32 %v110, %v923
    %v925 = vand.u32 %v924, 4294901760
    %v926 = vsub.f32 %v924, %v925
    %v927 = vand.u32 %v926, 4294901760
    %928 = vmatpush.msra.mxu0 %v927
    %v929 = vand.u32 %v107, 4294901760
    %v930 = vsub.f32 %v107, %v929
    %v931 = vand.u32 %v930, 4294901760
    %v932 = vsub.f32 %v930, %v931
    %v933 = vand.u32 %v932, 4294901760
    %934 = vmatpush.msra.mxu0 %v933
    %v935 = vand.u32 %v104, 4294901760
    %v936 = vsub.f32 %v104, %v935
    %v937 = vand.u32 %v936, 4294901760
    %v938 = vsub.f32 %v936, %v937
    %v939 = vand.u32 %v938, 4294901760
    %940 = vmatpush.msra.mxu0 %v939
    %v941 = vand.u32 %v101, 4294901760
    %v942 = vsub.f32 %v101, %v941
    %v943 = vand.u32 %v942, 4294901760
    %v944 = vsub.f32 %v942, %v943
    %v945 = vand.u32 %v944, 4294901760
    %946 = vmatpush.msra.mxu0 %v945
    %v947 = vand.u32 %v98, 4294901760
    %v948 = vsub.f32 %v98, %v947
    %v949 = vand.u32 %v948, 4294901760
    %v950 = vsub.f32 %v948, %v949
    %v951 = vand.u32 %v950, 4294901760
    %952 = vmatpush.msra.mxu0 %v951
    %v953 = vand.u32 %v95, 4294901760
    %v954 = vsub.f32 %v95, %v953
    %v955 = vand.u32 %v954, 4294901760
    %v956 = vsub.f32 %v954, %v955
    %v957 = vand.u32 %v956, 4294901760
    %958 = vmatpush.msra.mxu0 %v957
    %v959 = vand.u32 %v92, 4294901760
    %v960 = vsub.f32 %v92, %v959
    %v961 = vand.u32 %v960, 4294901760
    %v962 = vsub.f32 %v960, %v961
    %v963 = vand.u32 %v962, 4294901760
    %964 = vmatpush.msra.mxu0 %v963
    %v965 = vand.u32 %v89, 4294901760
    %966 = vmatmul.f32.gmra.mxu0 %v965
    %v967 = vpop.f32.mrf.mxu0
    %v968 = vadd.f32 %v867, %v967
    %969 = vdwg.mxu0
    %v970 = vand.u32 %v137, 4294901760
    %v971 = vsub.f32 %v137, %v970
    %972 = vmatpush.msra.mxu0 %v971
    %v973 = vand.u32 %v134, 4294901760
    %v974 = vsub.f32 %v134, %v973
    %975 = vmatpush.msra.mxu0 %v974
    %v976 = vand.u32 %v131, 4294901760
    %v977 = vsub.f32 %v131, %v976
    %978 = vmatpush.msra.mxu0 %v977
    %v979 = vand.u32 %v128, 4294901760
    %v980 = vsub.f32 %v128, %v979
    %981 = vmatpush.msra.mxu0 %v980
    %v982 = vand.u32 %v125, 4294901760
    %v983 = vsub.f32 %v125, %v982
    %984 = vmatpush.msra.mxu0 %v983
    %v985 = vand.u32 %v122, 4294901760
    %v986 = vsub.f32 %v122, %v985
    %987 = vmatpush.msra.mxu0 %v986
    %v988 = vand.u32 %v119, 4294901760
    %v989 = vsub.f32 %v119, %v988
    %990 = vmatpush.msra.mxu0 %v989
    %v991 = vand.u32 %v116, 4294901760
    %v992 = vsub.f32 %v116, %v991
    %993 = vmatpush.msra.mxu0 %v992
    %v994 = vand.u32 %v113, 4294901760
    %v995 = vsub.f32 %v113, %v994
    %996 = vmatpush.msra.mxu0 %v995
    %v997 = vand.u32 %v110, 4294901760
    %v998 = vsub.f32 %v110, %v997
    %999 = vmatpush.msra.mxu0 %v998
    %v1000 = vand.u32 %v107, 4294901760
    %v1001 = vsub.f32 %v107, %v1000
    %1002 = vmatpush.msra.mxu0 %v1001
    %v1003 = vand.u32 %v104, 4294901760
    %v1004 = vsub.f32 %v104, %v1003
    %1005 = vmatpush.msra.mxu0 %v1004
    %v1006 = vand.u32 %v101, 4294901760
    %v1007 = vsub.f32 %v101, %v1006
    %1008 = vmatpush.msra.mxu0 %v1007
    %v1009 = vand.u32 %v98, 4294901760
    %v1010 = vsub.f32 %v98, %v1009
    %1011 = vmatpush.msra.mxu0 %v1010
    %v1012 = vand.u32 %v95, 4294901760
    %v1013 = vsub.f32 %v95, %v1012
    %1014 = vmatpush.msra.mxu0 %v1013
    %v1015 = vand.u32 %v92, 4294901760
    %v1016 = vsub.f32 %v92, %v1015
    %1017 = vmatpush.msra.mxu0 %v1016
    %v1018 = vand.u32 %v89, 4294901760
    %v1019 = vsub.f32 %v89, %v1018
    %1020 = vmatmul.f32.gmra.mxu0 %v1019
    %v1021 = vpop.f32.mrf.mxu0
    %v1022 = vadd.f32 %v968, %v1021
    %1023 = vdwg.mxu0
    %v1024 = vand.u32 %v137, 4294901760
    %1025 = vmatpush.msra.mxu0 %v1024
    %v1026 = vand.u32 %v134, 4294901760
    %1027 = vmatpush.msra.mxu0 %v1026
    %v1028 = vand.u32 %v131, 4294901760
    %1029 = vmatpush.msra.mxu0 %v1028
    %v1030 = vand.u32 %v128, 4294901760
    %1031 = vmatpush.msra.mxu0 %v1030
    %v1032 = vand.u32 %v125, 4294901760
    %1033 = vmatpush.msra.mxu0 %v1032
    %v1034 = vand.u32 %v122, 4294901760
    %1035 = vmatpush.msra.mxu0 %v1034
    %v1036 = vand.u32 %v119, 4294901760
    %1037 = vmatpush.msra.mxu0 %v1036
    %v1038 = vand.u32 %v116, 4294901760
    %1039 = vmatpush.msra.mxu0 %v1038
    %v1040 = vand.u32 %v113, 4294901760
    %1041 = vmatpush.msra.mxu0 %v1040
    %v1042 = vand.u32 %v110, 4294901760
    %1043 = vmatpush.msra.mxu0 %v1042
    %v1044 = vand.u32 %v107, 4294901760
    %1045 = vmatpush.msra.mxu0 %v1044
    %v1046 = vand.u32 %v104, 4294901760
    %1047 = vmatpush.msra.mxu0 %v1046
    %v1048 = vand.u32 %v101, 4294901760
    %1049 = vmatpush.msra.mxu0 %v1048
    %v1050 = vand.u32 %v98, 4294901760
    %1051 = vmatpush.msra.mxu0 %v1050
    %v1052 = vand.u32 %v95, 4294901760
    %1053 = vmatpush.msra.mxu0 %v1052
    %v1054 = vand.u32 %v92, 4294901760
    %1055 = vmatpush.msra.mxu0 %v1054
    %v1056 = vand.u32 %v89, 4294901760
    %v1057 = vsub.f32 %v89, %v1056
    %v1058 = vand.u32 %v1057, 4294901760
    %1059 = vmatmul.f32.gmra.mxu0 %v1058
    %v1060 = vpop.f32.mrf.mxu0
    %v1061 = vadd.f32 %v1022, %v1060
    %1062 = vdwg.mxu0
    %v1063 = vand.u32 %v137, 4294901760
    %v1064 = vsub.f32 %v137, %v1063
    %v1065 = vand.u32 %v1064, 4294901760
    %1066 = vmatpush.msra.mxu0 %v1065
    %v1067 = vand.u32 %v134, 4294901760
    %v1068 = vsub.f32 %v134, %v1067
    %v1069 = vand.u32 %v1068, 4294901760
    %1070 = vmatpush.msra.mxu0 %v1069
    %v1071 = vand.u32 %v131, 4294901760
    %v1072 = vsub.f32 %v131, %v1071
    %v1073 = vand.u32 %v1072, 4294901760
    %1074 = vmatpush.msra.mxu0 %v1073
    %v1075 = vand.u32 %v128, 4294901760
    %v1076 = vsub.f32 %v128, %v1075
    %v1077 = vand.u32 %v1076, 4294901760
    %1078 = vmatpush.msra.mxu0 %v1077
    %v1079 = vand.u32 %v125, 4294901760
    %v1080 = vsub.f32 %v125, %v1079
    %v1081 = vand.u32 %v1080, 4294901760
    %1082 = vmatpush.msra.mxu0 %v1081
    %v1083 = vand.u32 %v122, 4294901760
    %v1084 = vsub.f32 %v122, %v1083
    %v1085 = vand.u32 %v1084, 4294901760
    %1086 = vmatpush.msra.mxu0 %v1085
    %v1087 = vand.u32 %v119, 4294901760
    %v1088 = vsub.f32 %v119, %v1087
    %v1089 = vand.u32 %v1088, 4294901760
    %1090 = vmatpush.msra.mxu0 %v1089
    %v1091 = vand.u32 %v116, 4294901760
    %v1092 = vsub.f32 %v116, %v1091
    %v1093 = vand.u32 %v1092, 4294901760
    %1094 = vmatpush.msra.mxu0 %v1093
    %v1095 = vand.u32 %v113, 4294901760
    %v1096 = vsub.f32 %v113, %v1095
    %v1097 = vand.u32 %v1096, 4294901760
    %1098 = vmatpush.msra.mxu0 %v1097
    %v1099 = vand.u32 %v110, 4294901760
    %v1100 = vsub.f32 %v110, %v1099
    %v1101 = vand.u32 %v1100, 4294901760
    %1102 = vmatpush.msra.mxu0 %v1101
    %v1103 = vand.u32 %v107, 4294901760
    %v1104 = vsub.f32 %v107, %v1103
    %v1105 = vand.u32 %v1104, 4294901760
    %1106 = vmatpush.msra.mxu0 %v1105
    %v1107 = vand.u32 %v104, 4294901760
    %v1108 = vsub.f32 %v104, %v1107
    %v1109 = vand.u32 %v1108, 4294901760
    %1110 = vmatpush.msra.mxu0 %v1109
    %v1111 = vand.u32 %v101, 4294901760
    %v1112 = vsub.f32 %v101, %v1111
    %v1113 = vand.u32 %v1112, 4294901760
    %1114 = vmatpush.msra.mxu0 %v1113
    %v1115 = vand.u32 %v98, 4294901760
    %v1116 = vsub.f32 %v98, %v1115
    %v1117 = vand.u32 %v1116, 4294901760
    %1118 = vmatpush.msra.mxu0 %v1117
    %v1119 = vand.u32 %v95, 4294901760
    %v1120 = vsub.f32 %v95, %v1119
    %v1121 = vand.u32 %v1120, 4294901760
    %1122 = vmatpush.msra.mxu0 %v1121
    %v1123 = vand.u32 %v92, 4294901760
    %v1124 = vsub.f32 %v92, %v1123
    %v1125 = vand.u32 %v1124, 4294901760
    %1126 = vmatpush.msra.mxu0 %v1125
    %v1127 = vand.u32 %v89, 4294901760
    %1128 = vmatmul.f32.gmra.mxu0 %v1127
    %v1129 = vpop.f32.mrf.mxu0
    %v1130 = vadd.f32 %v1061, %v1129
    %1131 = vdwg.mxu0
    %v1132 = vand.u32 %v137, 4294901760
    %1133 = vmatpush.msra.mxu0 %v1132
    %v1134 = vand.u32 %v134, 4294901760
    %1135 = vmatpush.msra.mxu0 %v1134
    %v1136 = vand.u32 %v131, 4294901760
    %1137 = vmatpush.msra.mxu0 %v1136
    %v1138 = vand.u32 %v128, 4294901760
    %1139 = vmatpush.msra.mxu0 %v1138
    %v1140 = vand.u32 %v125, 4294901760
    %1141 = vmatpush.msra.mxu0 %v1140
    %v1142 = vand.u32 %v122, 4294901760
    %1143 = vmatpush.msra.mxu0 %v1142
    %v1144 = vand.u32 %v119, 4294901760
    %1145 = vmatpush.msra.mxu0 %v1144
    %v1146 = vand.u32 %v116, 4294901760
    %1147 = vmatpush.msra.mxu0 %v1146
    %v1148 = vand.u32 %v113, 4294901760
    %1149 = vmatpush.msra.mxu0 %v1148
    %v1150 = vand.u32 %v110, 4294901760
    %1151 = vmatpush.msra.mxu0 %v1150
    %v1152 = vand.u32 %v107, 4294901760
    %1153 = vmatpush.msra.mxu0 %v1152
    %v1154 = vand.u32 %v104, 4294901760
    %1155 = vmatpush.msra.mxu0 %v1154
    %v1156 = vand.u32 %v101, 4294901760
    %1157 = vmatpush.msra.mxu0 %v1156
    %v1158 = vand.u32 %v98, 4294901760
    %1159 = vmatpush.msra.mxu0 %v1158
    %v1160 = vand.u32 %v95, 4294901760
    %1161 = vmatpush.msra.mxu0 %v1160
    %v1162 = vand.u32 %v92, 4294901760
    %1163 = vmatpush.msra.mxu0 %v1162
    %v1164 = vand.u32 %v89, 4294901760
    %1165 = vmatmul.f32.gmra.mxu0 %v1164
    %v1166 = vpop.f32.mrf.mxu0
    %v1167 = vadd.f32 %v1130, %v1166
    %1168 = vdwg.mxu0
    %v1169 = vld [vmem:[#allocation10] sm:$0xff]
    %v1170 = vld [vmem:[#allocation10 + $0x8] sm:$0xff]
    %v1171 = vld [vmem:[#allocation10 + $0x10] sm:$0xff]
    %v1172 = vld [vmem:[#allocation10 + $0x18] sm:$0xff]
    %v1173 = vld [vmem:[#allocation10 + $0x20] sm:$0xff]
    %v1174 = vld [vmem:[#allocation10 + $0x28] sm:$0xff]
    %v1175 = vld [vmem:[#allocation10 + $0x30] sm:$0xff]
    %v1176 = vld [vmem:[#allocation10 + $0x38] sm:$0xff]
    %v1177 = vld [vmem:[#allocation10 + $0x40] sm:$0xff]
    %v1178 = vld [vmem:[#allocation10 + $0x48] sm:$0xff]
    %v1179 = vld [vmem:[#allocation10 + $0x50] sm:$0xff]
    %v1180 = vld [vmem:[#allocation10 + $0x58] sm:$0xff]
    %v1181 = vld [vmem:[#allocation10 + $0x60] sm:$0xff]
    %v1182 = vld [vmem:[#allocation10 + $0x68] sm:$0xff]
    %v1183 = vld [vmem:[#allocation10 + $0x70] sm:$0xff]
    %v1184 = vld [vmem:[#allocation10 + $0x78] sm:$0xff]
    %v1185 = vld [vmem:[#allocation10 + $0x80] sm:$0xff]
    %v1186 = vld [vmem:[#allocation10 + $0x88] sm:$0xff]
    %v1187 = vld [vmem:[#allocation10 + $0x90] sm:$0xff]
    %v1188 = vld [vmem:[#allocation10 + $0x98] sm:$0xff]
    %v1189 = vld [vmem:[#allocation10 + $0xa0] sm:$0xff]
    %v1190 = vld [vmem:[#allocation10 + $0xa8] sm:$0xff]
    %v1191 = vld [vmem:[#allocation10 + $0xb0] sm:$0xff]
    %v1192 = vld [vmem:[#allocation10 + $0xb8] sm:$0xff]
    %v1193 = vld [vmem:[#allocation10 + $0xc0] sm:$0xff]
    %v1194 = vld [vmem:[#allocation10 + $0xc8] sm:$0xff]
    %v1195 = vld [vmem:[#allocation10 + $0xd0] sm:$0xff]
    %v1196 = vld [vmem:[#allocation10 + $0xd8] sm:$0xff]
    %v1197 = vld [vmem:[#allocation10 + $0xe0] sm:$0xff]
    %v1198 = vld [vmem:[#allocation10 + $0xe8] sm:$0xff]
    %v1199 = vld [vmem:[#allocation10 + $0xf0] sm:$0xff]
    %v1200 = vld [vmem:[#allocation10 + $0xf8] sm:$0xff]
    %v1201 = vld [vmem:[#allocation10 + $0x100] sm:$0xff]
    %v1202 = vld [vmem:[#allocation10 + $0x108] sm:$0xff]
    %v1203 = vld [vmem:[#allocation10 + $0x110] sm:$0xff]
    %v1204 = vld [vmem:[#allocation10 + $0x118] sm:$0xff]
    %v1205 = vld [vmem:[#allocation10 + $0x120] sm:$0xff]
    %v1206 = vld [vmem:[#allocation10 + $0x128] sm:$0xff]
    %v1207 = vld [vmem:[#allocation10 + $0x130] sm:$0xff]
    %v1208 = vld [vmem:[#allocation10 + $0x138] sm:$0xff]
    %v1209 = vld [vmem:[#allocation10 + $0x140] sm:$0xff]
    %v1210 = vld [vmem:[#allocation10 + $0x148] sm:$0xff]
    %v1211 = vld [vmem:[#allocation10 + $0x150] sm:$0xff]
    %v1212 = vld [vmem:[#allocation10 + $0x158] sm:$0xff]
    %v1213 = vld [vmem:[#allocation10 + $0x160] sm:$0xff]
    %v1214 = vld [vmem:[#allocation10 + $0x168] sm:$0xff]
    %v1215 = vld [vmem:[#allocation10 + $0x170] sm:$0xff]
    %v1216 = vld [vmem:[#allocation10 + $0x178] sm:$0xff]
    %v1217 = vld [vmem:[%s6] sm:$0x7]
    %v1218 = vld [vmem:[#allocation7] sm:$0x1]
    %v1220 = vperm.slane %v1217, 0
    %v1221 = vperm.slane %v1217, 1
    %v1222 = vperm.slane %v1217, 2
    %v1226 = vand.u32 %v1214, 4294901760
    %1227 = vmatpush.msra.mxu0 %v1226
    %v1228 = vand.u32 %v1211, 4294901760
    %1229 = vmatpush.msra.mxu0 %v1228
    %v1230 = vand.u32 %v1208, 4294901760
    %1231 = vmatpush.msra.mxu0 %v1230
    %v1232 = vand.u32 %v1205, 4294901760
    %1233 = vmatpush.msra.mxu0 %v1232
    %v1234 = vand.u32 %v1202, 4294901760
    %1235 = vmatpush.msra.mxu0 %v1234
    %v1236 = vand.u32 %v1199, 4294901760
    %1237 = vmatpush.msra.mxu0 %v1236
    %v1238 = vand.u32 %v1196, 4294901760
    %1239 = vmatpush.msra.mxu0 %v1238
    %v1240 = vand.u32 %v1193, 4294901760
    %1241 = vmatpush.msra.mxu0 %v1240
    %v1242 = vand.u32 %v1190, 4294901760
    %1243 = vmatpush.msra.mxu0 %v1242
    %v1244 = vand.u32 %v1187, 4294901760
    %1245 = vmatpush.msra.mxu0 %v1244
    %v1246 = vand.u32 %v1184, 4294901760
    %1247 = vmatpush.msra.mxu0 %v1246
    %v1248 = vand.u32 %v1181, 4294901760
    %1249 = vmatpush.msra.mxu0 %v1248
    %v1250 = vand.u32 %v1178, 4294901760
    %1251 = vmatpush.msra.mxu0 %v1250
    %v1252 = vand.u32 %v1175, 4294901760
    %1253 = vmatpush.msra.mxu0 %v1252
    %v1254 = vand.u32 %v1172, 4294901760
    %1255 = vmatpush.msra.mxu0 %v1254
    %v1256 = vand.u32 %v1169, 4294901760
    %1257 = vmatpush.msra.mxu0 %v1256
    %v1258 = vand.u32 %v1218, 4294901760
    %v1259 = vsub.f32 %v1218, %v1258
    %v1260 = vand.u32 %v1259, 4294901760
    %v1261 = vsub.f32 %v1259, %v1260
    %v1262 = vand.u32 %v1261, 4294901760
    %1263 = vmatmul.f32.gmra.mxu0 %v1262
    %v1264 = vpop.f32.mrf.mxu0
    %v1265 = vadd.f32 %v1220, %v1264
    %1266 = vdwg.mxu0
    %v1267 = vand.u32 %v1214, 4294901760
    %v1268 = vsub.f32 %v1214, %v1267
    %v1269 = vand.u32 %v1268, 4294901760
    %v1270 = vsub.f32 %v1268, %v1269
    %v1271 = vand.u32 %v1270, 4294901760
    %1272 = vmatpush.msra.mxu0 %v1271
    %v1273 = vand.u32 %v1211, 4294901760
    %v1274 = vsub.f32 %v1211, %v1273
    %v1275 = vand.u32 %v1274, 4294901760
    %v1276 = vsub.f32 %v1274, %v1275
    %v1277 = vand.u32 %v1276, 4294901760
    %1278 = vmatpush.msra.mxu0 %v1277
    %v1279 = vand.u32 %v1208, 4294901760
    %v1280 = vsub.f32 %v1208, %v1279
    %v1281 = vand.u32 %v1280, 4294901760
    %v1282 = vsub.f32 %v1280, %v1281
    %v1283 = vand.u32 %v1282, 4294901760
    %1284 = vmatpush.msra.mxu0 %v1283
    %v1285 = vand.u32 %v1205, 4294901760
    %v1286 = vsub.f32 %v1205, %v1285
    %v1287 = vand.u32 %v1286, 4294901760
    %v1288 = vsub.f32 %v1286, %v1287
    %v1289 = vand.u32 %v1288, 4294901760
    %1290 = vmatpush.msra.mxu0 %v1289
    %v1291 = vand.u32 %v1202, 4294901760
    %v1292 = vsub.f32 %v1202, %v1291
    %v1293 = vand.u32 %v1292, 4294901760
    %v1294 = vsub.f32 %v1292, %v1293
    %v1295 = vand.u32 %v1294, 4294901760
    %1296 = vmatpush.msra.mxu0 %v1295
    %v1297 = vand.u32 %v1199, 4294901760
    %v1298 = vsub.f32 %v1199, %v1297
    %v1299 = vand.u32 %v1298, 4294901760
    %v1300 = vsub.f32 %v1298, %v1299
    %v1301 = vand.u32 %v1300, 4294901760
    %1302 = vmatpush.msra.mxu0 %v1301
    %v1303 = vand.u32 %v1196, 4294901760
    %v1304 = vsub.f32 %v1196, %v1303
    %v1305 = vand.u32 %v1304, 4294901760
    %v1306 = vsub.f32 %v1304, %v1305
    %v1307 = vand.u32 %v1306, 4294901760
    %1308 = vmatpush.msra.mxu0 %v1307
    %v1309 = vand.u32 %v1193, 4294901760
    %v1310 = vsub.f32 %v1193, %v1309
    %v1311 = vand.u32 %v1310, 4294901760
    %v1312 = vsub.f32 %v1310, %v1311
    %v1313 = vand.u32 %v1312, 4294901760
    %1314 = vmatpush.msra.mxu0 %v1313
    %v1315 = vand.u32 %v1190, 4294901760
    %v1316 = vsub.f32 %v1190, %v1315
    %v1317 = vand.u32 %v1316, 4294901760
    %v1318 = vsub.f32 %v1316, %v1317
    %v1319 = vand.u32 %v1318, 4294901760
    %1320 = vmatpush.msra.mxu0 %v1319
    %v1321 = vand.u32 %v1187, 4294901760
    %v1322 = vsub.f32 %v1187, %v1321
    %v1323 = vand.u32 %v1322, 4294901760
    %v1324 = vsub.f32 %v1322, %v1323
    %v1325 = vand.u32 %v1324, 4294901760
    %1326 = vmatpush.msra.mxu0 %v1325
    %v1327 = vand.u32 %v1184, 4294901760
    %v1328 = vsub.f32 %v1184, %v1327
    %v1329 = vand.u32 %v1328, 4294901760
    %v1330 = vsub.f32 %v1328, %v1329
    %v1331 = vand.u32 %v1330, 4294901760
    %1332 = vmatpush.msra.mxu0 %v1331
    %v1333 = vand.u32 %v1181, 4294901760
    %v1334 = vsub.f32 %v1181, %v1333
    %v1335 = vand.u32 %v1334, 4294901760
    %v1336 = vsub.f32 %v1334, %v1335
    %v1337 = vand.u32 %v1336, 4294901760
    %1338 = vmatpush.msra.mxu0 %v1337
    %v1339 = vand.u32 %v1178, 4294901760
    %v1340 = vsub.f32 %v1178, %v1339
    %v1341 = vand.u32 %v1340, 4294901760
    %v1342 = vsub.f32 %v1340, %v1341
    %v1343 = vand.u32 %v1342, 4294901760
    %1344 = vmatpush.msra.mxu0 %v1343
    %v1345 = vand.u32 %v1175, 4294901760
    %v1346 = vsub.f32 %v1175, %v1345
    %v1347 = vand.u32 %v1346, 4294901760
    %v1348 = vsub.f32 %v1346, %v1347
    %v1349 = vand.u32 %v1348, 4294901760
    %1350 = vmatpush.msra.mxu0 %v1349
    %v1351 = vand.u32 %v1172, 4294901760
    %v1352 = vsub.f32 %v1172, %v1351
    %v1353 = vand.u32 %v1352, 4294901760
    %v1354 = vsub.f32 %v1352, %v1353
    %v1355 = vand.u32 %v1354, 4294901760
    %1356 = vmatpush.msra.mxu0 %v1355
    %v1357 = vand.u32 %v1169, 4294901760
    %v1358 = vsub.f32 %v1169, %v1357
    %v1359 = vand.u32 %v1358, 4294901760
    %v1360 = vsub.f32 %v1358, %v1359
    %v1361 = vand.u32 %v1360, 4294901760
    %1362 = vmatpush.msra.mxu0 %v1361
    %v1363 = vand.u32 %v1218, 4294901760
    %1364 = vmatmul.f32.gmra.mxu0 %v1363
    %v1365 = vpop.f32.mrf.mxu0
    %v1366 = vadd.f32 %v1265, %v1365
    %1367 = vdwg.mxu0
    %v1368 = vand.u32 %v1214, 4294901760
    %v1369 = vsub.f32 %v1214, %v1368
    %1370 = vmatpush.msra.mxu0 %v1369
    %v1371 = vand.u32 %v1211, 4294901760
    %v1372 = vsub.f32 %v1211, %v1371
    %1373 = vmatpush.msra.mxu0 %v1372
    %v1374 = vand.u32 %v1208, 4294901760
    %v1375 = vsub.f32 %v1208, %v1374
    %1376 = vmatpush.msra.mxu0 %v1375
    %v1377 = vand.u32 %v1205, 4294901760
    %v1378 = vsub.f32 %v1205, %v1377
    %1379 = vmatpush.msra.mxu0 %v1378
    %v1380 = vand.u32 %v1202, 4294901760
    %v1381 = vsub.f32 %v1202, %v1380
    %1382 = vmatpush.msra.mxu0 %v1381
    %v1383 = vand.u32 %v1199, 4294901760
    %v1384 = vsub.f32 %v1199, %v1383
    %1385 = vmatpush.msra.mxu0 %v1384
    %v1386 = vand.u32 %v1196, 4294901760
    %v1387 = vsub.f32 %v1196, %v1386
    %1388 = vmatpush.msra.mxu0 %v1387
    %v1389 = vand.u32 %v1193, 4294901760
    %v1390 = vsub.f32 %v1193, %v1389
    %1391 = vmatpush.msra.mxu0 %v1390
    %v1392 = vand.u32 %v1190, 4294901760
    %v1393 = vsub.f32 %v1190, %v1392
    %1394 = vmatpush.msra.mxu0 %v1393
    %v1395 = vand.u32 %v1187, 4294901760
    %v1396 = vsub.f32 %v1187, %v1395
    %1397 = vmatpush.msra.mxu0 %v1396
    %v1398 = vand.u32 %v1184, 4294901760
    %v1399 = vsub.f32 %v1184, %v1398
    %1400 = vmatpush.msra.mxu0 %v1399
    %v1401 = vand.u32 %v1181, 4294901760
    %v1402 = vsub.f32 %v1181, %v1401
    %1403 = vmatpush.msra.mxu0 %v1402
    %v1404 = vand.u32 %v1178, 4294901760
    %v1405 = vsub.f32 %v1178, %v1404
    %1406 = vmatpush.msra.mxu0 %v1405
    %v1407 = vand.u32 %v1175, 4294901760
    %v1408 = vsub.f32 %v1175, %v1407
    %1409 = vmatpush.msra.mxu0 %v1408
    %v1410 = vand.u32 %v1172, 4294901760
    %v1411 = vsub.f32 %v1172, %v1410
    %1412 = vmatpush.msra.mxu0 %v1411
    %v1413 = vand.u32 %v1169, 4294901760
    %v1414 = vsub.f32 %v1169, %v1413
    %1415 = vmatpush.msra.mxu0 %v1414
    %v1416 = vand.u32 %v1218, 4294901760
    %v1417 = vsub.f32 %v1218, %v1416
    %1418 = vmatmul.f32.gmra.mxu0 %v1417
    %v1419 = vpop.f32.mrf.mxu0
    %v1420 = vadd.f32 %v1366, %v1419
    %1421 = vdwg.mxu0
    %v1422 = vand.u32 %v1214, 4294901760
    %1423 = vmatpush.msra.mxu0 %v1422
    %v1424 = vand.u32 %v1211, 4294901760
    %1425 = vmatpush.msra.mxu0 %v1424
    %v1426 = vand.u32 %v1208, 4294901760
    %1427 = vmatpush.msra.mxu0 %v1426
    %v1428 = vand.u32 %v1205, 4294901760
    %1429 = vmatpush.msra.mxu0 %v1428
    %v1430 = vand.u32 %v1202, 4294901760
    %1431 = vmatpush.msra.mxu0 %v1430
    %v1432 = vand.u32 %v1199, 4294901760
    %1433 = vmatpush.msra.mxu0 %v1432
    %v1434 = vand.u32 %v1196, 4294901760
    %1435 = vmatpush.msra.mxu0 %v1434
    %v1436 = vand.u32 %v1193, 4294901760
    %1437 = vmatpush.msra.mxu0 %v1436
    %v1438 = vand.u32 %v1190, 4294901760
    %1439 = vmatpush.msra.mxu0 %v1438
    %v1440 = vand.u32 %v1187, 4294901760
    %1441 = vmatpush.msra.mxu0 %v1440
    %v1442 = vand.u32 %v1184, 4294901760
    %1443 = vmatpush.msra.mxu0 %v1442
    %v1444 = vand.u32 %v1181, 4294901760
    %1445 = vmatpush.msra.mxu0 %v1444
    %v1446 = vand.u32 %v1178, 4294901760
    %1447 = vmatpush.msra.mxu0 %v1446
    %v1448 = vand.u32 %v1175, 4294901760
    %1449 = vmatpush.msra.mxu0 %v1448
    %v1450 = vand.u32 %v1172, 4294901760
    %1451 = vmatpush.msra.mxu0 %v1450
    %v1452 = vand.u32 %v1169, 4294901760
    %1453 = vmatpush.msra.mxu0 %v1452
    %v1454 = vand.u32 %v1218, 4294901760
    %v1455 = vsub.f32 %v1218, %v1454
    %v1456 = vand.u32 %v1455, 4294901760
    %1457 = vmatmul.f32.gmra.mxu0 %v1456
    %v1458 = vpop.f32.mrf.mxu0
    %v1459 = vadd.f32 %v1420, %v1458
    %1460 = vdwg.mxu0
    %v1461 = vand.u32 %v1214, 4294901760
    %v1462 = vsub.f32 %v1214, %v1461
    %v1463 = vand.u32 %v1462, 4294901760
    %1464 = vmatpush.msra.mxu0 %v1463
    %v1465 = vand.u32 %v1211, 4294901760
    %v1466 = vsub.f32 %v1211, %v1465
    %v1467 = vand.u32 %v1466, 4294901760
    %1468 = vmatpush.msra.mxu0 %v1467
    %v1469 = vand.u32 %v1208, 4294901760
    %v1470 = vsub.f32 %v1208, %v1469
    %v1471 = vand.u32 %v1470, 4294901760
    %1472 = vmatpush.msra.mxu0 %v1471
    %v1473 = vand.u32 %v1205, 4294901760
    %v1474 = vsub.f32 %v1205, %v1473
    %v1475 = vand.u32 %v1474, 4294901760
    %1476 = vmatpush.msra.mxu0 %v1475
    %v1477 = vand.u32 %v1202, 4294901760
    %v1478 = vsub.f32 %v1202, %v1477
    %v1479 = vand.u32 %v1478, 4294901760
    %1480 = vmatpush.msra.mxu0 %v1479
    %v1481 = vand.u32 %v1199, 4294901760
    %v1482 = vsub.f32 %v1199, %v1481
    %v1483 = vand.u32 %v1482, 4294901760
    %1484 = vmatpush.msra.mxu0 %v1483
    %v1485 = vand.u32 %v1196, 4294901760
    %v1486 = vsub.f32 %v1196, %v1485
    %v1487 = vand.u32 %v1486, 4294901760
    %1488 = vmatpush.msra.mxu0 %v1487
    %v1489 = vand.u32 %v1193, 4294901760
    %v1490 = vsub.f32 %v1193, %v1489
    %v1491 = vand.u32 %v1490, 4294901760
    %1492 = vmatpush.msra.mxu0 %v1491
    %v1493 = vand.u32 %v1190, 4294901760
    %v1494 = vsub.f32 %v1190, %v1493
    %v1495 = vand.u32 %v1494, 4294901760
    %1496 = vmatpush.msra.mxu0 %v1495
    %v1497 = vand.u32 %v1187, 4294901760
    %v1498 = vsub.f32 %v1187, %v1497
    %v1499 = vand.u32 %v1498, 4294901760
    %1500 = vmatpush.msra.mxu0 %v1499
    %v1501 = vand.u32 %v1184, 4294901760
    %v1502 = vsub.f32 %v1184, %v1501
    %v1503 = vand.u32 %v1502, 4294901760
    %1504 = vmatpush.msra.mxu0 %v1503
    %v1505 = vand.u32 %v1181, 4294901760
    %v1506 = vsub.f32 %v1181, %v1505
    %v1507 = vand.u32 %v1506, 4294901760
    %1508 = vmatpush.msra.mxu0 %v1507
    %v1509 = vand.u32 %v1178, 4294901760
    %v1510 = vsub.f32 %v1178, %v1509
    %v1511 = vand.u32 %v1510, 4294901760
    %1512 = vmatpush.msra.mxu0 %v1511
    %v1513 = vand.u32 %v1175, 4294901760
    %v1514 = vsub.f32 %v1175, %v1513
    %v1515 = vand.u32 %v1514, 4294901760
    %1516 = vmatpush.msra.mxu0 %v1515
    %v1517 = vand.u32 %v1172, 4294901760
    %v1518 = vsub.f32 %v1172, %v1517
    %v1519 = vand.u32 %v1518, 4294901760
    %1520 = vmatpush.msra.mxu0 %v1519
    %v1521 = vand.u32 %v1169, 4294901760
    %v1522 = vsub.f32 %v1169, %v1521
    %v1523 = vand.u32 %v1522, 4294901760
    %1524 = vmatpush.msra.mxu0 %v1523
    %v1525 = vand.u32 %v1218, 4294901760
    %1526 = vmatmul.f32.gmra.mxu0 %v1525
    %v1527 = vpop.f32.mrf.mxu0
    %v1528 = vadd.f32 %v1459, %v1527
    %1529 = vdwg.mxu0
    %v1530 = vand.u32 %v1214, 4294901760
    %1531 = vmatpush.msra.mxu0 %v1530
    %v1532 = vand.u32 %v1211, 4294901760
    %1533 = vmatpush.msra.mxu0 %v1532
    %v1534 = vand.u32 %v1208, 4294901760
    %1535 = vmatpush.msra.mxu0 %v1534
    %v1536 = vand.u32 %v1205, 4294901760
    %1537 = vmatpush.msra.mxu0 %v1536
    %v1538 = vand.u32 %v1202, 4294901760
    %1539 = vmatpush.msra.mxu0 %v1538
    %v1540 = vand.u32 %v1199, 4294901760
    %1541 = vmatpush.msra.mxu0 %v1540
    %v1542 = vand.u32 %v1196, 4294901760
    %1543 = vmatpush.msra.mxu0 %v1542
    %v1544 = vand.u32 %v1193, 4294901760
    %1545 = vmatpush.msra.mxu0 %v1544
    %v1546 = vand.u32 %v1190, 4294901760
    %1547 = vmatpush.msra.mxu0 %v1546
    %v1548 = vand.u32 %v1187, 4294901760
    %1549 = vmatpush.msra.mxu0 %v1548
    %v1550 = vand.u32 %v1184, 4294901760
    %1551 = vmatpush.msra.mxu0 %v1550
    %v1552 = vand.u32 %v1181, 4294901760
    %1553 = vmatpush.msra.mxu0 %v1552
    %v1554 = vand.u32 %v1178, 4294901760
    %1555 = vmatpush.msra.mxu0 %v1554
    %v1556 = vand.u32 %v1175, 4294901760
    %1557 = vmatpush.msra.mxu0 %v1556
    %v1558 = vand.u32 %v1172, 4294901760
    %1559 = vmatpush.msra.mxu0 %v1558
    %v1560 = vand.u32 %v1169, 4294901760
    %1561 = vmatpush.msra.mxu0 %v1560
    %v1562 = vand.u32 %v1218, 4294901760
    %1563 = vmatmul.f32.gmra.mxu0 %v1562
    %v1564 = vpop.f32.mrf.mxu0
    %v1565 = vadd.f32 %v1528, %v1564
    %1566 = vdwg.mxu0
    %v1567 = vand.u32 %v1215, 4294901760
    %1568 = vmatpush.msra.mxu0 %v1567
    %v1569 = vand.u32 %v1212, 4294901760
    %1570 = vmatpush.msra.mxu0 %v1569
    %v1571 = vand.u32 %v1209, 4294901760
    %1572 = vmatpush.msra.mxu0 %v1571
    %v1573 = vand.u32 %v1206, 4294901760
    %1574 = vmatpush.msra.mxu0 %v1573
    %v1575 = vand.u32 %v1203, 4294901760
    %1576 = vmatpush.msra.mxu0 %v1575
    %v1577 = vand.u32 %v1200, 4294901760
    %1578 = vmatpush.msra.mxu0 %v1577
    %v1579 = vand.u32 %v1197, 4294901760
    %1580 = vmatpush.msra.mxu0 %v1579
    %v1581 = vand.u32 %v1194, 4294901760
    %1582 = vmatpush.msra.mxu0 %v1581
    %v1583 = vand.u32 %v1191, 4294901760
    %1584 = vmatpush.msra.mxu0 %v1583
    %v1585 = vand.u32 %v1188, 4294901760
    %1586 = vmatpush.msra.mxu0 %v1585
    %v1587 = vand.u32 %v1185, 4294901760
    %1588 = vmatpush.msra.mxu0 %v1587
    %v1589 = vand.u32 %v1182, 4294901760
    %1590 = vmatpush.msra.mxu0 %v1589
    %v1591 = vand.u32 %v1179, 4294901760
    %1592 = vmatpush.msra.mxu0 %v1591
    %v1593 = vand.u32 %v1176, 4294901760
    %1594 = vmatpush.msra.mxu0 %v1593
    %v1595 = vand.u32 %v1173, 4294901760
    %1596 = vmatpush.msra.mxu0 %v1595
    %v1597 = vand.u32 %v1170, 4294901760
    %1598 = vmatpush.msra.mxu0 %v1597
    %v1599 = vand.u32 %v1218, 4294901760
    %v1600 = vsub.f32 %v1218, %v1599
    %v1601 = vand.u32 %v1600, 4294901760
    %v1602 = vsub.f32 %v1600, %v1601
    %v1603 = vand.u32 %v1602, 4294901760
    %1604 = vmatmul.f32.gmra.mxu0 %v1603
    %v1605 = vpop.f32.mrf.mxu0
    %v1606 = vadd.f32 %v1221, %v1605
    %1607 = vdwg.mxu0
    %v1608 = vand.u32 %v1215, 4294901760
    %v1609 = vsub.f32 %v1215, %v1608
    %v1610 = vand.u32 %v1609, 4294901760
    %v1611 = vsub.f32 %v1609, %v1610
    %v1612 = vand.u32 %v1611, 4294901760
    %1613 = vmatpush.msra.mxu0 %v1612
    %v1614 = vand.u32 %v1212, 4294901760
    %v1615 = vsub.f32 %v1212, %v1614
    %v1616 = vand.u32 %v1615, 4294901760
    %v1617 = vsub.f32 %v1615, %v1616
    %v1618 = vand.u32 %v1617, 4294901760
    %1619 = vmatpush.msra.mxu0 %v1618
    %v1620 = vand.u32 %v1209, 4294901760
    %v1621 = vsub.f32 %v1209, %v1620
    %v1622 = vand.u32 %v1621, 4294901760
    %v1623 = vsub.f32 %v1621, %v1622
    %v1624 = vand.u32 %v1623, 4294901760
    %1625 = vmatpush.msra.mxu0 %v1624
    %v1626 = vand.u32 %v1206, 4294901760
    %v1627 = vsub.f32 %v1206, %v1626
    %v1628 = vand.u32 %v1627, 4294901760
    %v1629 = vsub.f32 %v1627, %v1628
    %v1630 = vand.u32 %v1629, 4294901760
    %1631 = vmatpush.msra.mxu0 %v1630
    %v1632 = vand.u32 %v1203, 4294901760
    %v1633 = vsub.f32 %v1203, %v1632
    %v1634 = vand.u32 %v1633, 4294901760
    %v1635 = vsub.f32 %v1633, %v1634
    %v1636 = vand.u32 %v1635, 4294901760
    %1637 = vmatpush.msra.mxu0 %v1636
    %v1638 = vand.u32 %v1200, 4294901760
    %v1639 = vsub.f32 %v1200, %v1638
    %v1640 = vand.u32 %v1639, 4294901760
    %v1641 = vsub.f32 %v1639, %v1640
    %v1642 = vand.u32 %v1641, 4294901760
    %1643 = vmatpush.msra.mxu0 %v1642
    %v1644 = vand.u32 %v1197, 4294901760
    %v1645 = vsub.f32 %v1197, %v1644
    %v1646 = vand.u32 %v1645, 4294901760
    %v1647 = vsub.f32 %v1645, %v1646
    %v1648 = vand.u32 %v1647, 4294901760
    %1649 = vmatpush.msra.mxu0 %v1648
    %v1650 = vand.u32 %v1194, 4294901760
    %v1651 = vsub.f32 %v1194, %v1650
    %v1652 = vand.u32 %v1651, 4294901760
    %v1653 = vsub.f32 %v1651, %v1652
    %v1654 = vand.u32 %v1653, 4294901760
    %1655 = vmatpush.msra.mxu0 %v1654
    %v1656 = vand.u32 %v1191, 4294901760
    %v1657 = vsub.f32 %v1191, %v1656
    %v1658 = vand.u32 %v1657, 4294901760
    %v1659 = vsub.f32 %v1657, %v1658
    %v1660 = vand.u32 %v1659, 4294901760
    %1661 = vmatpush.msra.mxu0 %v1660
    %v1662 = vand.u32 %v1188, 4294901760
    %v1663 = vsub.f32 %v1188, %v1662
    %v1664 = vand.u32 %v1663, 4294901760
    %v1665 = vsub.f32 %v1663, %v1664
    %v1666 = vand.u32 %v1665, 4294901760
    %1667 = vmatpush.msra.mxu0 %v1666
    %v1668 = vand.u32 %v1185, 4294901760
    %v1669 = vsub.f32 %v1185, %v1668
    %v1670 = vand.u32 %v1669, 4294901760
    %v1671 = vsub.f32 %v1669, %v1670
    %v1672 = vand.u32 %v1671, 4294901760
    %1673 = vmatpush.msra.mxu0 %v1672
    %v1674 = vand.u32 %v1182, 4294901760
    %v1675 = vsub.f32 %v1182, %v1674
    %v1676 = vand.u32 %v1675, 4294901760
    %v1677 = vsub.f32 %v1675, %v1676
    %v1678 = vand.u32 %v1677, 4294901760
    %1679 = vmatpush.msra.mxu0 %v1678
    %v1680 = vand.u32 %v1179, 4294901760
    %v1681 = vsub.f32 %v1179, %v1680
    %v1682 = vand.u32 %v1681, 4294901760
    %v1683 = vsub.f32 %v1681, %v1682
    %v1684 = vand.u32 %v1683, 4294901760
    %1685 = vmatpush.msra.mxu0 %v1684
    %v1686 = vand.u32 %v1176, 4294901760
    %v1687 = vsub.f32 %v1176, %v1686
    %v1688 = vand.u32 %v1687, 4294901760
    %v1689 = vsub.f32 %v1687, %v1688
    %v1690 = vand.u32 %v1689, 4294901760
    %1691 = vmatpush.msra.mxu0 %v1690
    %v1692 = vand.u32 %v1173, 4294901760
    %v1693 = vsub.f32 %v1173, %v1692
    %v1694 = vand.u32 %v1693, 4294901760
    %v1695 = vsub.f32 %v1693, %v1694
    %v1696 = vand.u32 %v1695, 4294901760
    %1697 = vmatpush.msra.mxu0 %v1696
    %v1698 = vand.u32 %v1170, 4294901760
    %v1699 = vsub.f32 %v1170, %v1698
    %v1700 = vand.u32 %v1699, 4294901760
    %v1701 = vsub.f32 %v1699, %v1700
    %v1702 = vand.u32 %v1701, 4294901760
    %1703 = vmatpush.msra.mxu0 %v1702
    %v1704 = vand.u32 %v1218, 4294901760
    %1705 = vmatmul.f32.gmra.mxu0 %v1704
    %v1706 = vpop.f32.mrf.mxu0
    %v1707 = vadd.f32 %v1606, %v1706
    %1708 = vdwg.mxu0
    %v1709 = vand.u32 %v1215, 4294901760
    %v1710 = vsub.f32 %v1215, %v1709
    %1711 = vmatpush.msra.mxu0 %v1710
    %v1712 = vand.u32 %v1212, 4294901760
    %v1713 = vsub.f32 %v1212, %v1712
    %1714 = vmatpush.msra.mxu0 %v1713
    %v1715 = vand.u32 %v1209, 4294901760
    %v1716 = vsub.f32 %v1209, %v1715
    %1717 = vmatpush.msra.mxu0 %v1716
    %v1718 = vand.u32 %v1206, 4294901760
    %v1719 = vsub.f32 %v1206, %v1718
    %1720 = vmatpush.msra.mxu0 %v1719
    %v1721 = vand.u32 %v1203, 4294901760
    %v1722 = vsub.f32 %v1203, %v1721
    %1723 = vmatpush.msra.mxu0 %v1722
    %v1724 = vand.u32 %v1200, 4294901760
    %v1725 = vsub.f32 %v1200, %v1724
    %1726 = vmatpush.msra.mxu0 %v1725
    %v1727 = vand.u32 %v1197, 4294901760
    %v1728 = vsub.f32 %v1197, %v1727
    %1729 = vmatpush.msra.mxu0 %v1728
    %v1730 = vand.u32 %v1194, 4294901760
    %v1731 = vsub.f32 %v1194, %v1730
    %1732 = vmatpush.msra.mxu0 %v1731
    %v1733 = vand.u32 %v1191, 4294901760
    %v1734 = vsub.f32 %v1191, %v1733
    %1735 = vmatpush.msra.mxu0 %v1734
    %v1736 = vand.u32 %v1188, 4294901760
    %v1737 = vsub.f32 %v1188, %v1736
    %1738 = vmatpush.msra.mxu0 %v1737
    %v1739 = vand.u32 %v1185, 4294901760
    %v1740 = vsub.f32 %v1185, %v1739
    %1741 = vmatpush.msra.mxu0 %v1740
    %v1742 = vand.u32 %v1182, 4294901760
    %v1743 = vsub.f32 %v1182, %v1742
    %1744 = vmatpush.msra.mxu0 %v1743
    %v1745 = vand.u32 %v1179, 4294901760
    %v1746 = vsub.f32 %v1179, %v1745
    %1747 = vmatpush.msra.mxu0 %v1746
    %v1748 = vand.u32 %v1176, 4294901760
    %v1749 = vsub.f32 %v1176, %v1748
    %1750 = vmatpush.msra.mxu0 %v1749
    %v1751 = vand.u32 %v1173, 4294901760
    %v1752 = vsub.f32 %v1173, %v1751
    %1753 = vmatpush.msra.mxu0 %v1752
    %v1754 = vand.u32 %v1170, 4294901760
    %v1755 = vsub.f32 %v1170, %v1754
    %1756 = vmatpush.msra.mxu0 %v1755
    %v1757 = vand.u32 %v1218, 4294901760
    %v1758 = vsub.f32 %v1218, %v1757
    %1759 = vmatmul.f32.gmra.mxu0 %v1758
    %v1760 = vpop.f32.mrf.mxu0
    %v1761 = vadd.f32 %v1707, %v1760
    %1762 = vdwg.mxu0
    %v1763 = vand.u32 %v1215, 4294901760
    %1764 = vmatpush.msra.mxu0 %v1763
    %v1765 = vand.u32 %v1212, 4294901760
    %1766 = vmatpush.msra.mxu0 %v1765
    %v1767 = vand.u32 %v1209, 4294901760
    %1768 = vmatpush.msra.mxu0 %v1767
    %v1769 = vand.u32 %v1206, 4294901760
    %1770 = vmatpush.msra.mxu0 %v1769
    %v1771 = vand.u32 %v1203, 4294901760
    %1772 = vmatpush.msra.mxu0 %v1771
    %v1773 = vand.u32 %v1200, 4294901760
    %1774 = vmatpush.msra.mxu0 %v1773
    %v1775 = vand.u32 %v1197, 4294901760
    %1776 = vmatpush.msra.mxu0 %v1775
    %v1777 = vand.u32 %v1194, 4294901760
    %1778 = vmatpush.msra.mxu0 %v1777
    %v1779 = vand.u32 %v1191, 4294901760
    %1780 = vmatpush.msra.mxu0 %v1779
    %v1781 = vand.u32 %v1188, 4294901760
    %1782 = vmatpush.msra.mxu0 %v1781
    %v1783 = vand.u32 %v1185, 4294901760
    %1784 = vmatpush.msra.mxu0 %v1783
    %v1785 = vand.u32 %v1182, 4294901760
    %1786 = vmatpush.msra.mxu0 %v1785
    %v1787 = vand.u32 %v1179, 4294901760
    %1788 = vmatpush.msra.mxu0 %v1787
    %v1789 = vand.u32 %v1176, 4294901760
    %1790 = vmatpush.msra.mxu0 %v1789
    %v1791 = vand.u32 %v1173, 4294901760
    %1792 = vmatpush.msra.mxu0 %v1791
    %v1793 = vand.u32 %v1170, 4294901760
    %1794 = vmatpush.msra.mxu0 %v1793
    %v1795 = vand.u32 %v1218, 4294901760
    %v1796 = vsub.f32 %v1218, %v1795
    %v1797 = vand.u32 %v1796, 4294901760
    %1798 = vmatmul.f32.gmra.mxu0 %v1797
    %v1799 = vpop.f32.mrf.mxu0
    %v1800 = vadd.f32 %v1761, %v1799
    %1801 = vdwg.mxu0
    %v1802 = vand.u32 %v1215, 4294901760
    %v1803 = vsub.f32 %v1215, %v1802
    %v1804 = vand.u32 %v1803, 4294901760
    %1805 = vmatpush.msra.mxu0 %v1804
    %v1806 = vand.u32 %v1212, 4294901760
    %v1807 = vsub.f32 %v1212, %v1806
    %v1808 = vand.u32 %v1807, 4294901760
    %1809 = vmatpush.msra.mxu0 %v1808
    %v1810 = vand.u32 %v1209, 4294901760
    %v1811 = vsub.f32 %v1209, %v1810
    %v1812 = vand.u32 %v1811, 4294901760
    %1813 = vmatpush.msra.mxu0 %v1812
    %v1814 = vand.u32 %v1206, 4294901760
    %v1815 = vsub.f32 %v1206, %v1814
    %v1816 = vand.u32 %v1815, 4294901760
    %1817 = vmatpush.msra.mxu0 %v1816
    %v1818 = vand.u32 %v1203, 4294901760
    %v1819 = vsub.f32 %v1203, %v1818
    %v1820 = vand.u32 %v1819, 4294901760
    %1821 = vmatpush.msra.mxu0 %v1820
    %v1822 = vand.u32 %v1200, 4294901760
    %v1823 = vsub.f32 %v1200, %v1822
    %v1824 = vand.u32 %v1823, 4294901760
    %1825 = vmatpush.msra.mxu0 %v1824
    %v1826 = vand.u32 %v1197, 4294901760
    %v1827 = vsub.f32 %v1197, %v1826
    %v1828 = vand.u32 %v1827, 4294901760
    %1829 = vmatpush.msra.mxu0 %v1828
    %v1830 = vand.u32 %v1194, 4294901760
    %v1831 = vsub.f32 %v1194, %v1830
    %v1832 = vand.u32 %v1831, 4294901760
    %1833 = vmatpush.msra.mxu0 %v1832
    %v1834 = vand.u32 %v1191, 4294901760
    %v1835 = vsub.f32 %v1191, %v1834
    %v1836 = vand.u32 %v1835, 4294901760
    %1837 = vmatpush.msra.mxu0 %v1836
    %v1838 = vand.u32 %v1188, 4294901760
    %v1839 = vsub.f32 %v1188, %v1838
    %v1840 = vand.u32 %v1839, 4294901760
    %1841 = vmatpush.msra.mxu0 %v1840
    %v1842 = vand.u32 %v1185, 4294901760
    %v1843 = vsub.f32 %v1185, %v1842
    %v1844 = vand.u32 %v1843, 4294901760
    %1845 = vmatpush.msra.mxu0 %v1844
    %v1846 = vand.u32 %v1182, 4294901760
    %v1847 = vsub.f32 %v1182, %v1846
    %v1848 = vand.u32 %v1847, 4294901760
    %1849 = vmatpush.msra.mxu0 %v1848
    %v1850 = vand.u32 %v1179, 4294901760
    %v1851 = vsub.f32 %v1179, %v1850
    %v1852 = vand.u32 %v1851, 4294901760
    %1853 = vmatpush.msra.mxu0 %v1852
    %v1854 = vand.u32 %v1176, 4294901760
    %v1855 = vsub.f32 %v1176, %v1854
    %v1856 = vand.u32 %v1855, 4294901760
    %1857 = vmatpush.msra.mxu0 %v1856
    %v1858 = vand.u32 %v1173, 4294901760
    %v1859 = vsub.f32 %v1173, %v1858
    %v1860 = vand.u32 %v1859, 4294901760
    %1861 = vmatpush.msra.mxu0 %v1860
    %v1862 = vand.u32 %v1170, 4294901760
    %v1863 = vsub.f32 %v1170, %v1862
    %v1864 = vand.u32 %v1863, 4294901760
    %1865 = vmatpush.msra.mxu0 %v1864
    %v1866 = vand.u32 %v1218, 4294901760
    %1867 = vmatmul.f32.gmra.mxu0 %v1866
    %v1868 = vpop.f32.mrf.mxu0
    %v1869 = vadd.f32 %v1800, %v1868
    %1870 = vdwg.mxu0
    %v1871 = vand.u32 %v1215, 4294901760
    %1872 = vmatpush.msra.mxu0 %v1871
    %v1873 = vand.u32 %v1212, 4294901760
    %1874 = vmatpush.msra.mxu0 %v1873
    %v1875 = vand.u32 %v1209, 4294901760
    %1876 = vmatpush.msra.mxu0 %v1875
    %v1877 = vand.u32 %v1206, 4294901760
    %1878 = vmatpush.msra.mxu0 %v1877
    %v1879 = vand.u32 %v1203, 4294901760
    %1880 = vmatpush.msra.mxu0 %v1879
    %v1881 = vand.u32 %v1200, 4294901760
    %1882 = vmatpush.msra.mxu0 %v1881
    %v1883 = vand.u32 %v1197, 4294901760
    %1884 = vmatpush.msra.mxu0 %v1883
    %v1885 = vand.u32 %v1194, 4294901760
    %1886 = vmatpush.msra.mxu0 %v1885
    %v1887 = vand.u32 %v1191, 4294901760
    %1888 = vmatpush.msra.mxu0 %v1887
    %v1889 = vand.u32 %v1188, 4294901760
    %1890 = vmatpush.msra.mxu0 %v1889
    %v1891 = vand.u32 %v1185, 4294901760
    %1892 = vmatpush.msra.mxu0 %v1891
    %v1893 = vand.u32 %v1182, 4294901760
    %1894 = vmatpush.msra.mxu0 %v1893
    %v1895 = vand.u32 %v1179, 4294901760
    %1896 = vmatpush.msra.mxu0 %v1895
    %v1897 = vand.u32 %v1176, 4294901760
    %1898 = vmatpush.msra.mxu0 %v1897
    %v1899 = vand.u32 %v1173, 4294901760
    %1900 = vmatpush.msra.mxu0 %v1899
    %v1901 = vand.u32 %v1170, 4294901760
    %1902 = vmatpush.msra.mxu0 %v1901
    %v1903 = vand.u32 %v1218, 4294901760
    %1904 = vmatmul.f32.gmra.mxu0 %v1903
    %v1905 = vpop.f32.mrf.mxu0
    %v1906 = vadd.f32 %v1869, %v1905
    %1907 = vdwg.mxu0
    %v1908 = vand.u32 %v1216, 4294901760
    %1909 = vmatpush.msra.mxu0 %v1908
    %v1910 = vand.u32 %v1213, 4294901760
    %1911 = vmatpush.msra.mxu0 %v1910
    %v1912 = vand.u32 %v1210, 4294901760
    %1913 = vmatpush.msra.mxu0 %v1912
    %v1914 = vand.u32 %v1207, 4294901760
    %1915 = vmatpush.msra.mxu0 %v1914
    %v1916 = vand.u32 %v1204, 4294901760
    %1917 = vmatpush.msra.mxu0 %v1916
    %v1918 = vand.u32 %v1201, 4294901760
    %1919 = vmatpush.msra.mxu0 %v1918
    %v1920 = vand.u32 %v1198, 4294901760
    %1921 = vmatpush.msra.mxu0 %v1920
    %v1922 = vand.u32 %v1195, 4294901760
    %1923 = vmatpush.msra.mxu0 %v1922
    %v1924 = vand.u32 %v1192, 4294901760
    %1925 = vmatpush.msra.mxu0 %v1924
    %v1926 = vand.u32 %v1189, 4294901760
    %1927 = vmatpush.msra.mxu0 %v1926
    %v1928 = vand.u32 %v1186, 4294901760
    %1929 = vmatpush.msra.mxu0 %v1928
    %v1930 = vand.u32 %v1183, 4294901760
    %1931 = vmatpush.msra.mxu0 %v1930
    %v1932 = vand.u32 %v1180, 4294901760
    %1933 = vmatpush.msra.mxu0 %v1932
    %v1934 = vand.u32 %v1177, 4294901760
    %1935 = vmatpush.msra.mxu0 %v1934
    %v1936 = vand.u32 %v1174, 4294901760
    %1937 = vmatpush.msra.mxu0 %v1936
    %v1938 = vand.u32 %v1171, 4294901760
    %1939 = vmatpush.msra.mxu0 %v1938
    %v1940 = vand.u32 %v1218, 4294901760
    %v1941 = vsub.f32 %v1218, %v1940
    %v1942 = vand.u32 %v1941, 4294901760
    %v1943 = vsub.f32 %v1941, %v1942
    %v1944 = vand.u32 %v1943, 4294901760
    %1945 = vmatmul.f32.gmra.mxu0 %v1944
    %v1946 = vpop.f32.mrf.mxu0
    %v1947 = vadd.f32 %v1222, %v1946
    %1948 = vdwg.mxu0
    %v1949 = vand.u32 %v1216, 4294901760
    %v1950 = vsub.f32 %v1216, %v1949
    %v1951 = vand.u32 %v1950, 4294901760
    %v1952 = vsub.f32 %v1950, %v1951
    %v1953 = vand.u32 %v1952, 4294901760
    %1954 = vmatpush.msra.mxu0 %v1953
    %v1955 = vand.u32 %v1213, 4294901760
    %v1956 = vsub.f32 %v1213, %v1955
    %v1957 = vand.u32 %v1956, 4294901760
    %v1958 = vsub.f32 %v1956, %v1957
    %v1959 = vand.u32 %v1958, 4294901760
    %1960 = vmatpush.msra.mxu0 %v1959
    %v1961 = vand.u32 %v1210, 4294901760
    %v1962 = vsub.f32 %v1210, %v1961
    %v1963 = vand.u32 %v1962, 4294901760
    %v1964 = vsub.f32 %v1962, %v1963
    %v1965 = vand.u32 %v1964, 4294901760
    %1966 = vmatpush.msra.mxu0 %v1965
    %v1967 = vand.u32 %v1207, 4294901760
    %v1968 = vsub.f32 %v1207, %v1967
    %v1969 = vand.u32 %v1968, 4294901760
    %v1970 = vsub.f32 %v1968, %v1969
    %v1971 = vand.u32 %v1970, 4294901760
    %1972 = vmatpush.msra.mxu0 %v1971
    %v1973 = vand.u32 %v1204, 4294901760
    %v1974 = vsub.f32 %v1204, %v1973
    %v1975 = vand.u32 %v1974, 4294901760
    %v1976 = vsub.f32 %v1974, %v1975
    %v1977 = vand.u32 %v1976, 4294901760
    %1978 = vmatpush.msra.mxu0 %v1977
    %v1979 = vand.u32 %v1201, 4294901760
    %v1980 = vsub.f32 %v1201, %v1979
    %v1981 = vand.u32 %v1980, 4294901760
    %v1982 = vsub.f32 %v1980, %v1981
    %v1983 = vand.u32 %v1982, 4294901760
    %1984 = vmatpush.msra.mxu0 %v1983
    %v1985 = vand.u32 %v1198, 4294901760
    %v1986 = vsub.f32 %v1198, %v1985
    %v1987 = vand.u32 %v1986, 4294901760
    %v1988 = vsub.f32 %v1986, %v1987
    %v1989 = vand.u32 %v1988, 4294901760
    %1990 = vmatpush.msra.mxu0 %v1989
    %v1991 = vand.u32 %v1195, 4294901760
    %v1992 = vsub.f32 %v1195, %v1991
    %v1993 = vand.u32 %v1992, 4294901760
    %v1994 = vsub.f32 %v1992, %v1993
    %v1995 = vand.u32 %v1994, 4294901760
    %1996 = vmatpush.msra.mxu0 %v1995
    %v1997 = vand.u32 %v1192, 4294901760
    %v1998 = vsub.f32 %v1192, %v1997
    %v1999 = vand.u32 %v1998, 4294901760
    %v2000 = vsub.f32 %v1998, %v1999
    %v2001 = vand.u32 %v2000, 4294901760
    %2002 = vmatpush.msra.mxu0 %v2001
    %v2003 = vand.u32 %v1189, 4294901760
    %v2004 = vsub.f32 %v1189, %v2003
    %v2005 = vand.u32 %v2004, 4294901760
    %v2006 = vsub.f32 %v2004, %v2005
    %v2007 = vand.u32 %v2006, 4294901760
    %2008 = vmatpush.msra.mxu0 %v2007
    %v2009 = vand.u32 %v1186, 4294901760
    %v2010 = vsub.f32 %v1186, %v2009
    %v2011 = vand.u32 %v2010, 4294901760
    %v2012 = vsub.f32 %v2010, %v2011
    %v2013 = vand.u32 %v2012, 4294901760
    %2014 = vmatpush.msra.mxu0 %v2013
    %v2015 = vand.u32 %v1183, 4294901760
    %v2016 = vsub.f32 %v1183, %v2015
    %v2017 = vand.u32 %v2016, 4294901760
    %v2018 = vsub.f32 %v2016, %v2017
    %v2019 = vand.u32 %v2018, 4294901760
    %2020 = vmatpush.msra.mxu0 %v2019
    %v2021 = vand.u32 %v1180, 4294901760
    %v2022 = vsub.f32 %v1180, %v2021
    %v2023 = vand.u32 %v2022, 4294901760
    %v2024 = vsub.f32 %v2022, %v2023
    %v2025 = vand.u32 %v2024, 4294901760
    %2026 = vmatpush.msra.mxu0 %v2025
    %v2027 = vand.u32 %v1177, 4294901760
    %v2028 = vsub.f32 %v1177, %v2027
    %v2029 = vand.u32 %v2028, 4294901760
    %v2030 = vsub.f32 %v2028, %v2029
    %v2031 = vand.u32 %v2030, 4294901760
    %2032 = vmatpush.msra.mxu0 %v2031
    %v2033 = vand.u32 %v1174, 4294901760
    %v2034 = vsub.f32 %v1174, %v2033
    %v2035 = vand.u32 %v2034, 4294901760
    %v2036 = vsub.f32 %v2034, %v2035
    %v2037 = vand.u32 %v2036, 4294901760
    %2038 = vmatpush.msra.mxu0 %v2037
    %v2039 = vand.u32 %v1171, 4294901760
    %v2040 = vsub.f32 %v1171, %v2039
    %v2041 = vand.u32 %v2040, 4294901760
    %v2042 = vsub.f32 %v2040, %v2041
    %v2043 = vand.u32 %v2042, 4294901760
    %2044 = vmatpush.msra.mxu0 %v2043
    %v2045 = vand.u32 %v1218, 4294901760
    %2046 = vmatmul.f32.gmra.mxu0 %v2045
    %v2047 = vpop.f32.mrf.mxu0
    %v2048 = vadd.f32 %v1947, %v2047
    %2049 = vdwg.mxu0
    %v2050 = vand.u32 %v1216, 4294901760
    %v2051 = vsub.f32 %v1216, %v2050
    %2052 = vmatpush.msra.mxu0 %v2051
    %v2053 = vand.u32 %v1213, 4294901760
    %v2054 = vsub.f32 %v1213, %v2053
    %2055 = vmatpush.msra.mxu0 %v2054
    %v2056 = vand.u32 %v1210, 4294901760
    %v2057 = vsub.f32 %v1210, %v2056
    %2058 = vmatpush.msra.mxu0 %v2057
    %v2059 = vand.u32 %v1207, 4294901760
    %v2060 = vsub.f32 %v1207, %v2059
    %2061 = vmatpush.msra.mxu0 %v2060
    %v2062 = vand.u32 %v1204, 4294901760
    %v2063 = vsub.f32 %v1204, %v2062
    %2064 = vmatpush.msra.mxu0 %v2063
    %v2065 = vand.u32 %v1201, 4294901760
    %v2066 = vsub.f32 %v1201, %v2065
    %2067 = vmatpush.msra.mxu0 %v2066
    %v2068 = vand.u32 %v1198, 4294901760
    %v2069 = vsub.f32 %v1198, %v2068
    %2070 = vmatpush.msra.mxu0 %v2069
    %v2071 = vand.u32 %v1195, 4294901760
    %v2072 = vsub.f32 %v1195, %v2071
    %2073 = vmatpush.msra.mxu0 %v2072
    %v2074 = vand.u32 %v1192, 4294901760
    %v2075 = vsub.f32 %v1192, %v2074
    %2076 = vmatpush.msra.mxu0 %v2075
    %v2077 = vand.u32 %v1189, 4294901760
    %v2078 = vsub.f32 %v1189, %v2077
    %2079 = vmatpush.msra.mxu0 %v2078
    %v2080 = vand.u32 %v1186, 4294901760
    %v2081 = vsub.f32 %v1186, %v2080
    %2082 = vmatpush.msra.mxu0 %v2081
    %v2083 = vand.u32 %v1183, 4294901760
    %v2084 = vsub.f32 %v1183, %v2083
    %2085 = vmatpush.msra.mxu0 %v2084
    %v2086 = vand.u32 %v1180, 4294901760
    %v2087 = vsub.f32 %v1180, %v2086
    %2088 = vmatpush.msra.mxu0 %v2087
    %v2089 = vand.u32 %v1177, 4294901760
    %v2090 = vsub.f32 %v1177, %v2089
    %2091 = vmatpush.msra.mxu0 %v2090
    %v2092 = vand.u32 %v1174, 4294901760
    %v2093 = vsub.f32 %v1174, %v2092
    %2094 = vmatpush.msra.mxu0 %v2093
    %v2095 = vand.u32 %v1171, 4294901760
    %v2096 = vsub.f32 %v1171, %v2095
    %2097 = vmatpush.msra.mxu0 %v2096
    %v2098 = vand.u32 %v1218, 4294901760
    %v2099 = vsub.f32 %v1218, %v2098
    %2100 = vmatmul.f32.gmra.mxu0 %v2099
    %v2101 = vpop.f32.mrf.mxu0
    %v2102 = vadd.f32 %v2048, %v2101
    %2103 = vdwg.mxu0
    %v2104 = vand.u32 %v1216, 4294901760
    %2105 = vmatpush.msra.mxu0 %v2104
    %v2106 = vand.u32 %v1213, 4294901760
    %2107 = vmatpush.msra.mxu0 %v2106
    %v2108 = vand.u32 %v1210, 4294901760
    %2109 = vmatpush.msra.mxu0 %v2108
    %v2110 = vand.u32 %v1207, 4294901760
    %2111 = vmatpush.msra.mxu0 %v2110
    %v2112 = vand.u32 %v1204, 4294901760
    %2113 = vmatpush.msra.mxu0 %v2112
    %v2114 = vand.u32 %v1201, 4294901760
    %2115 = vmatpush.msra.mxu0 %v2114
    %v2116 = vand.u32 %v1198, 4294901760
    %2117 = vmatpush.msra.mxu0 %v2116
    %v2118 = vand.u32 %v1195, 4294901760
    %2119 = vmatpush.msra.mxu0 %v2118
    %v2120 = vand.u32 %v1192, 4294901760
    %2121 = vmatpush.msra.mxu0 %v2120
    %v2122 = vand.u32 %v1189, 4294901760
    %2123 = vmatpush.msra.mxu0 %v2122
    %v2124 = vand.u32 %v1186, 4294901760
    %2125 = vmatpush.msra.mxu0 %v2124
    %v2126 = vand.u32 %v1183, 4294901760
    %2127 = vmatpush.msra.mxu0 %v2126
    %v2128 = vand.u32 %v1180, 4294901760
    %2129 = vmatpush.msra.mxu0 %v2128
    %v2130 = vand.u32 %v1177, 4294901760
    %2131 = vmatpush.msra.mxu0 %v2130
    %v2132 = vand.u32 %v1174, 4294901760
    %2133 = vmatpush.msra.mxu0 %v2132
    %v2134 = vand.u32 %v1171, 4294901760
    %2135 = vmatpush.msra.mxu0 %v2134
    %v2136 = vand.u32 %v1218, 4294901760
    %v2137 = vsub.f32 %v1218, %v2136
    %v2138 = vand.u32 %v2137, 4294901760
    %2139 = vmatmul.f32.gmra.mxu0 %v2138
    %v2140 = vpop.f32.mrf.mxu0
    %v2141 = vadd.f32 %v2102, %v2140
    %2142 = vdwg.mxu0
    %v2143 = vand.u32 %v1216, 4294901760
    %v2144 = vsub.f32 %v1216, %v2143
    %v2145 = vand.u32 %v2144, 4294901760
    %2146 = vmatpush.msra.mxu0 %v2145
    %v2147 = vand.u32 %v1213, 4294901760
    %v2148 = vsub.f32 %v1213, %v2147
    %v2149 = vand.u32 %v2148, 4294901760
    %2150 = vmatpush.msra.mxu0 %v2149
    %v2151 = vand.u32 %v1210, 4294901760
    %v2152 = vsub.f32 %v1210, %v2151
    %v2153 = vand.u32 %v2152, 4294901760
    %2154 = vmatpush.msra.mxu0 %v2153
    %v2155 = vand.u32 %v1207, 4294901760
    %v2156 = vsub.f32 %v1207, %v2155
    %v2157 = vand.u32 %v2156, 4294901760
    %2158 = vmatpush.msra.mxu0 %v2157
    %v2159 = vand.u32 %v1204, 4294901760
    %v2160 = vsub.f32 %v1204, %v2159
    %v2161 = vand.u32 %v2160, 4294901760
    %2162 = vmatpush.msra.mxu0 %v2161
    %v2163 = vand.u32 %v1201, 4294901760
    %v2164 = vsub.f32 %v1201, %v2163
    %v2165 = vand.u32 %v2164, 4294901760
    %2166 = vmatpush.msra.mxu0 %v2165
    %v2167 = vand.u32 %v1198, 4294901760
    %v2168 = vsub.f32 %v1198, %v2167
    %v2169 = vand.u32 %v2168, 4294901760
    %2170 = vmatpush.msra.mxu0 %v2169
    %v2171 = vand.u32 %v1195, 4294901760
    %v2172 = vsub.f32 %v1195, %v2171
    %v2173 = vand.u32 %v2172, 4294901760
    %2174 = vmatpush.msra.mxu0 %v2173
    %v2175 = vand.u32 %v1192, 4294901760
    %v2176 = vsub.f32 %v1192, %v2175
    %v2177 = vand.u32 %v2176, 4294901760
    %2178 = vmatpush.msra.mxu0 %v2177
    %v2179 = vand.u32 %v1189, 4294901760
    %v2180 = vsub.f32 %v1189, %v2179
    %v2181 = vand.u32 %v2180, 4294901760
    %2182 = vmatpush.msra.mxu0 %v2181
    %v2183 = vand.u32 %v1186, 4294901760
    %v2184 = vsub.f32 %v1186, %v2183
    %v2185 = vand.u32 %v2184, 4294901760
    %2186 = vmatpush.msra.mxu0 %v2185
    %v2187 = vand.u32 %v1183, 4294901760
    %v2188 = vsub.f32 %v1183, %v2187
    %v2189 = vand.u32 %v2188, 4294901760
    %2190 = vmatpush.msra.mxu0 %v2189
    %v2191 = vand.u32 %v1180, 4294901760
    %v2192 = vsub.f32 %v1180, %v2191
    %v2193 = vand.u32 %v2192, 4294901760
    %2194 = vmatpush.msra.mxu0 %v2193
    %v2195 = vand.u32 %v1177, 4294901760
    %v2196 = vsub.f32 %v1177, %v2195
    %v2197 = vand.u32 %v2196, 4294901760
    %2198 = vmatpush.msra.mxu0 %v2197
    %v2199 = vand.u32 %v1174, 4294901760
    %v2200 = vsub.f32 %v1174, %v2199
    %v2201 = vand.u32 %v2200, 4294901760
    %2202 = vmatpush.msra.mxu0 %v2201
    %v2203 = vand.u32 %v1171, 4294901760
    %v2204 = vsub.f32 %v1171, %v2203
    %v2205 = vand.u32 %v2204, 4294901760
    %2206 = vmatpush.msra.mxu0 %v2205
    %v2207 = vand.u32 %v1218, 4294901760
    %2208 = vmatmul.f32.gmra.mxu0 %v2207
    %v2209 = vpop.f32.mrf.mxu0
    %v2210 = vadd.f32 %v2141, %v2209
    %2211 = vdwg.mxu0
    %v2212 = vand.u32 %v1216, 4294901760
    %2213 = vmatpush.msra.mxu0 %v2212
    %v2214 = vand.u32 %v1213, 4294901760
    %2215 = vmatpush.msra.mxu0 %v2214
    %v2216 = vand.u32 %v1210, 4294901760
    %2217 = vmatpush.msra.mxu0 %v2216
    %v2218 = vand.u32 %v1207, 4294901760
    %2219 = vmatpush.msra.mxu0 %v2218
    %v2220 = vand.u32 %v1204, 4294901760
    %2221 = vmatpush.msra.mxu0 %v2220
    %v2222 = vand.u32 %v1201, 4294901760
    %2223 = vmatpush.msra.mxu0 %v2222
    %v2224 = vand.u32 %v1198, 4294901760
    %2225 = vmatpush.msra.mxu0 %v2224
    %v2226 = vand.u32 %v1195, 4294901760
    %2227 = vmatpush.msra.mxu0 %v2226
    %v2228 = vand.u32 %v1192, 4294901760
    %2229 = vmatpush.msra.mxu0 %v2228
    %v2230 = vand.u32 %v1189, 4294901760
    %2231 = vmatpush.msra.mxu0 %v2230
    %v2232 = vand.u32 %v1186, 4294901760
    %2233 = vmatpush.msra.mxu0 %v2232
    %v2234 = vand.u32 %v1183, 4294901760
    %2235 = vmatpush.msra.mxu0 %v2234
    %v2236 = vand.u32 %v1180, 4294901760
    %2237 = vmatpush.msra.mxu0 %v2236
    %v2238 = vand.u32 %v1177, 4294901760
    %2239 = vmatpush.msra.mxu0 %v2238
    %v2240 = vand.u32 %v1174, 4294901760
    %2241 = vmatpush.msra.mxu0 %v2240
    %v2242 = vand.u32 %v1171, 4294901760
    %2243 = vmatpush.msra.mxu0 %v2242
    %v2244 = vand.u32 %v1218, 4294901760
    %2245 = vmatmul.f32.gmra.mxu0 %v2244
    %v2246 = vpop.f32.mrf.mxu0
    %v2247 = vadd.f32 %v2210, %v2246
    %2248 = vdwg.mxu0
    %v2249 = vadd.f32 %v485, %v1565
    %v2250 = vxor.u32 %v2249, 2147483648
    %v2251 = vmul.f32 %v2250, 1.442695
    %v2252 = vpow.pop %v2251
    %v2253 = vadd.f32 %v2252, 1.0
    %v2254 = vrcp.pop %v2253
    %v2255 = vmul.f32 %v2253, %v2254
    %v2256 = vsub.f32 1.0, %v2255
    %v2257 = vmul.f32 %v2254, %v2256
    %v2258 = vadd.f32 %v2254, %v2257
    %vm2259 = vweird.f32 %v2253
    %vm2260 = vweird.f32 %v2254
    %vm2261 = vmor %vm2259, %vm2260
    %v2262 = vsel %vm2261, %v2254, %v2258
    %v2263 = vand.u32 2147483647, %v2253
    %vm2264 = vcmp.eq.f32.partialorder %v2263, 8.507059e+37
    %v2265 = vand.u32 %v2253, 2147483648
    %v2266 = vor.u32 1.1754944e-38, %v2265
    %v2267 = vsel %vm2264, %v2266, %v2262
    %v2268 = vmul.f32 1.0, %v2267
    %v2269 = vadd.f32 %v826, %v1906
    %v2270 = vxor.u32 %v2269, 2147483648
    %v2271 = vmul.f32 %v2270, 1.442695
    %v2272 = vpow.pop %v2271
    %v2273 = vadd.f32 %v2272, 1.0
    %v2274 = vrcp.pop %v2273
    %v2275 = vmul.f32 %v2273, %v2274
    %v2276 = vsub.f32 1.0, %v2275
    %v2277 = vmul.f32 %v2274, %v2276
    %v2278 = vadd.f32 %v2274, %v2277
    %vm2279 = vweird.f32 %v2273
    %vm2280 = vweird.f32 %v2274
    %vm2281 = vmor %vm2279, %vm2280
    %v2282 = vsel %vm2281, %v2274, %v2278
    %v2283 = vand.u32 2147483647, %v2273
    %vm2284 = vcmp.eq.f32.partialorder %v2283, 8.507059e+37
    %v2285 = vand.u32 %v2273, 2147483648
    %v2286 = vor.u32 1.1754944e-38, %v2285
    %v2287 = vsel %vm2284, %v2286, %v2282
    %v2288 = vmul.f32 1.0, %v2287
    %v2289 = vmul.f32 %v2268, %v2247
    %v2290 = vadd.f32 %v1167, %v2289
    %v2291 = vtanh.pop %v2290
    %v2292 = vsub.f32 1.0, %v2288
    %v2293 = vmul.f32 %v2292, %v2291
    %v2294 = vmul.f32 %v2288, %v1218
    %v2295 = vadd.f32 %v2293, %v2294
    %2296 = vst [vmem:[#allocation12] sm:$0x1] %v2295
    // Predicated region
    $region42: #{tpu_custom_call.1} parent=1 // pred_check
      _
    $region43: #{tpu_custom_call.1} parent=1 // pred_check_branch
      %2298 = sbr.rel (0) target = $region45
    $region44: #{tpu_custom_call.1} parent=1 // pred_region
      %2300 = vsyncadd [#allocation6], 0
      %s2302 = sshll.u32 [#allocation12], 4
      %s2303 = int_to_ptr.vmem [resolvable:$true] %s2302
      %s2304 = sshll.u32 %s7, 4
      %s2305 = int_to_ptr.hbm [resolvable:$true] %s2304
      %2307 = dma.vmem_to_hbm [thread:$0]  %s2303, 16, %s2305, [#allocation6]
    $region45: #{tpu_custom_call.1} parent=1 // pred_fallthru
      _
    // Predicated region
    $region46: #{tpu_custom_call.1} parent=1 // pred_check
      _
    $region47: #{tpu_custom_call.1} parent=1 // pred_check_branch
      %2309 = sbr.rel (0) target = $region49
    $region48: #{tpu_custom_call.1} parent=1 // pred_region
      %2311 = dma.done [#allocation6], 16
    $region49: #{tpu_custom_call.1} parent=1 // pred_fallthru
      _
    %2312 = vsyncpa [#allocation5], 1
    %2313 = vsyncpa [#allocation8], 1
    %2314 = vsyncpa [#allocation11], 1
    %2315 = vsyncpa [#allocation6], 1

</llo_original>
